<compile_context>
chip_gen: v7x
topology: tpu7x:2x2x1
jax: 0.10.0
libtpu: 0.0.40
codegen_flags: <defaults>
</compile_context>

<pallas_src>
import jax
import jax.numpy as jnp
from jax import lax
from jax.experimental import pallas as pl
from jax.experimental.pallas import tpu as pltpu

EPS = 1e-5  # torch.nn.LayerNorm default


def sentence_encoder_kernel(
    xcat_ref,                   # (S, B, 2I)   [x[t] | x[S-1-t]]
    wih_ref, bih_ref,           # (2I, 6H), (1, 6H)  fused input weights/biases (both dirs)
    whh_ref, bhn_ref,           # (2H, 6H), (1, 2H)  fused hidden weights, n-gate hidden bias
    ln_g_ref, ln_b_ref,         # (1, 2H) each
    wlin_ref, blin_ref,         # (2H, H), (1, H)
    out_ref,                    # (S, B, H)
    hid_ref,                    # (2, B, H)
    xproj_ref,                  # scratch: (S, B, 6H) hoisted input projections (both dirs)
    gru_ref,                    # scratch: (S, B, 2H) per-timestep states [fwd | bwd]
):
    S, B, _ = xcat_ref.shape
    H = wlin_ref.shape[-1]
    H2 = 2 * H
    G = 6 * H

    # ---- 1) hoisted input projection for BOTH directions: one big MXU matmul ----
    x2d = xcat_ref[...].reshape(S * B, xcat_ref.shape[-1])
    xp = jnp.dot(x2d, wih_ref[...], preferred_element_type=jnp.float32) + bih_ref[...]
    xproj_ref[...] = xp.reshape(S, B, G)

    # ---- 2) fused bidirectional recurrence: ONE matmul + ONE gate pass per step ----
    bhn = jnp.broadcast_to(bhn_ref[...], (B, H2))     # hoisted out of the loop

    def body(i, h):
        # h = [h_fwd | h_bwd]  (B, 2H); step i: fwd processes x[i], bwd processes x[S-1-i]
        tb = S - 1 - i
        ihc = xproj_ref[i]                                             # (B, 6H)
        hh = jnp.dot(h, whh_ref[...], preferred_element_type=jnp.float32)
        r = jax.nn.sigmoid(ihc[:, :H2] + hh[:, :H2])
        z = jax.nn.sigmoid(ihc[:, H2:2 * H2] + hh[:, H2:2 * H2])
        n = jnp.tanh(ihc[:, 2 * H2:] + r * (hh[:, 2 * H2:] + bhn))    # b_hn inside r*(...)
        h = (1.0 - z) * n + z * h
        gru_ref[i, :, :H] = h[:, :H]        # fwd state is the output at time i
        gru_ref[tb, :, H:] = h[:, H:]       # bwd state is the output at time S-1-i
        return h

    h0 = jnp.zeros((B, H2), jnp.float32)    # module ignores its `hidden` arg -> zero init
    h = lax.fori_loop(0, S, body, h0, unroll=True)

    hid_ref[0] = h[:, :H]
    hid_ref[1] = h[:, H:]

    # ---- 3) LayerNorm over the concatenated 2H feature dim (2-D view) ----
    g = gru_ref[...].reshape(S * B, H2)
    mean = jnp.mean(g, axis=-1, keepdims=True)
    cent = g - mean
    var = jnp.mean(cent * cent, axis=-1, keepdims=True)
    ln = cent * lax.rsqrt(var + EPS) * ln_g_ref[...] + ln_b_ref[...]

    # ---- 4) Linear(2H -> H) as one 2-D matmul ----
    proj = jnp.dot(ln, wlin_ref[...], preferred_element_type=jnp.float32) + blin_ref[...]
    out_ref[...] = proj.reshape(S, B, H).astype(out_ref.dtype)


def _fuse_gate_weights(w_f, w_b):
    """w_f, w_b: (3, A, H) stacked [r, z, n] per direction.

    Returns (2A, 6H) block-diagonal fused weight with gate-major column layout
    [r_f, r_b, z_f, z_b, n_f, n_b]; forward rows on top, backward rows on bottom.
    """
    A, H = w_f.shape[1], w_f.shape[2]
    zero = jnp.zeros((A, H), w_f.dtype)
    top = jnp.concatenate([w_f[0], zero, w_f[1], zero, w_f[2], zero], axis=-1)  # (A, 6H)
    bot = jnp.concatenate([zero, w_b[0], zero, w_b[1], zero, w_b[2]], axis=-1)  # (A, 6H)
    return jnp.concatenate([top, bot], axis=0)                                   # (2A, 6H)


def _fuse_biases(bi_f, bi_b, bh_f, bh_b):
    """(3, 1, H) each. Folds the r/z hidden biases into the input bias.

    Returns (bi_fused (1, 6H) with layout [r_f r_b z_f z_b n_f n_b], bhn (1, 2H))."""
    bi = jnp.concatenate(
        [bi_f[0] + bh_f[0], bi_b[0] + bh_b[0],
         bi_f[1] + bh_f[1], bi_b[1] + bh_b[1],
         bi_f[2],           bi_b[2]], axis=-1)
    bhn = jnp.concatenate([bh_f[2], bh_b[2]], axis=-1)
    return bi, bhn


def sentence_encoder_forward(x, hidden, params):
    """Matches SentenceEncoder.forward(input, hidden): `hidden` is ignored (GRU starts at 0)."""
    del hidden
    S, B, I = x.shape
    H = params["wlin"].shape[-1]

    # Pad batch to a multiple of 8 for sublane-dense layout (padded rows are independent
    # and sliced off afterwards).
    Bp = max(8, ((B + 7) // 8) * 8)
    if Bp != B:
        x = jnp.pad(x, ((0, 0), (0, Bp - B), (0, 0)))

    # Fused block-diagonal weights (gate-major interleaved columns).
    wih = _fuse_gate_weights(params["wi_f"], params["wi_b"])    # (2I, 6H)
    whh = _fuse_gate_weights(params["wh_f"], params["wh_b"])    # (2H, 6H)
    bih, bhn = _fuse_biases(params["bi_f"], params["bi_b"], params["bh_f"], params["bh_b"])

    # [x[t] | x[S-1-t]] so both directions' projections come from one matmul.
    xcat = jnp.concatenate([x, x[::-1]], axis=-1)               # (S, Bp, 2I)

    ordered = [
        xcat,
        wih, bih,
        whh, bhn,
        params["ln_g"], params["ln_b"],
        params["wlin"], params["blin"],
    ]

    # Explicit VMEM budget sized to the resident footprint (with generous margin),
    # clamped so it stays safe on v7x's 64 MiB VMEM.
    f32 = 4
    resident = f32 * (
        S * Bp * 2 * I                  # xcat
        + S * Bp * 6 * H                # xproj scratch
        + S * Bp * 2 * H                # gru scratch
        + S * Bp * H + 2 * Bp * H       # outputs
        + 2 * I * 6 * H + 6 * H         # fused input weights/bias
        + 2 * H * 6 * H + 2 * H         # fused hidden weights / b_hn
        + 4 * H                         # LayerNorm affine
        + 2 * H * H + H                 # Linear
    )
    vmem_limit = int(min(max(4 * resident, 16 << 20), 48 << 20))

    vmem_spec = pl.BlockSpec(memory_space=pltpu.MemorySpace.VMEM)

    out, hid = pl.pallas_call(
        sentence_encoder_kernel,
        out_shape=(
            jax.ShapeDtypeStruct((S, Bp, H), jnp.float32),
            jax.ShapeDtypeStruct((2, Bp, H), jnp.float32),
        ),
        in_specs=[vmem_spec] * len(ordered),
        out_specs=(vmem_spec, vmem_spec),
        scratch_shapes=[
            pltpu.VMEM((S, Bp, 6 * H), jnp.float32),
            pltpu.VMEM((S, Bp, 2 * H), jnp.float32),
        ],
        compiler_params=pltpu.CompilerParams(vmem_limit_bytes=vmem_limit),
    )(*ordered)

    if Bp != B:
        out = out[:, :B]
        hid = hid[:, :B]
    return out, hid


def init_params(key, input_size, hidden_size):
    """Deterministic synthetic params with shapes implied by nn.GRU / nn.Linear / nn.LayerNorm."""
    H, I = hidden_size, input_size
    bound = 1.0 / jnp.sqrt(jnp.float32(H))
    ks = jax.random.split(key, 12)

    def u(k, shape):
        return jax.random.uniform(k, shape, jnp.float32, -bound, bound)

    return dict(
        # weights stored transposed ((in, out)) per gate, stacked [r, z, n]
        wi_f=u(ks[0], (3, I, H)), wh_f=u(ks[1], (3, H, H)),
        bi_f=u(ks[2], (3, 1, H)), bh_f=u(ks[3], (3, 1, H)),
        wi_b=u(ks[4], (3, I, H)), wh_b=u(ks[5], (3, H, H)),
        bi_b=u(ks[6], (3, 1, H)), bh_b=u(ks[7], (3, 1, H)),
        ln_g=jnp.ones((1, 2 * H), jnp.float32),
        ln_b=jnp.zeros((1, 2 * H), jnp.float32),
        wlin=u(ks[8], (2 * H, H)),
        blin=u(ks[9], (1, H)),
    )


# ---------------- pure-JAX reference (same math, unfused) ----------------
def reference_forward(x, params):
    S, B, _ = x.shape

    def step(h, x_t, wi, wh, bi, bh):
        r = jax.nn.sigmoid(x_t @ wi[0] + bi[0] + h @ wh[0] + bh[0])
        z = jax.nn.sigmoid(x_t @ wi[1] + bi[1] + h @ wh[1] + bh[1])
        n = jnp.tanh(x_t @ wi[2] + bi[2] + r * (h @ wh[2] + bh[2]))
        return (1.0 - z) * n + z * h

    H = params["wlin"].shape[-1]
    h = jnp.zeros((B, H), jnp.float32)
    fwd = []
    for t in range(S):
        h = step(h, x[t], params["wi_f"], params["wh_f"], params["bi_f"], params["bh_f"])
        fwd.append(h)
    h_f = h

    h = jnp.zeros((B, H), jnp.float32)
    bwd = [None] * S
    for t in range(S - 1, -1, -1):
        h = step(h, x[t], params["wi_b"], params["wh_b"], params["bi_b"], params["bh_b"])
        bwd[t] = h
    h_b = h

    gru_out = jnp.concatenate([jnp.stack(fwd), jnp.stack(bwd)], axis=-1)
    mean = jnp.mean(gru_out, axis=-1, keepdims=True)
    var = jnp.mean((gru_out - mean) ** 2, axis=-1, keepdims=True)
    ln = (gru_out - mean) / jnp.sqrt(var + EPS) * params["ln_g"] + params["ln_b"]
    out = jnp.einsum("sbk,kh->sbh", ln, params["wlin"]) + params["blin"]
    return out, jnp.stack([h_f, h_b])


if __name__ == "__main__":
    SEQ, BATCH, INPUT_SIZE, HIDDEN_SIZE = 8, 4, 16, 32

    key = jax.random.PRNGKey(0)
    k_x, k_p = jax.random.split(key)
    x = jax.random.normal(k_x, (SEQ, BATCH, INPUT_SIZE), jnp.float32)
    hidden0 = jnp.zeros((2, BATCH, HIDDEN_SIZE), jnp.float32)  # ignored, like the module
    params = init_params(k_p, INPUT_SIZE, HIDDEN_SIZE)

    out, hid = sentence_encoder_forward(x, hidden0, params)
    out, hid = jax.block_until_ready((out, hid))

    ref_out, ref_hid = reference_forward(x, params)

    assert out.shape == (SEQ, BATCH, HIDDEN_SIZE) and hid.shape == (2, BATCH, HIDDEN_SIZE)
    assert bool(jnp.all(jnp.isfinite(out))) and bool(jnp.all(jnp.isfinite(hid)))
    assert jnp.allclose(out, ref_out, rtol=1e-2, atol=1e-2)
    assert jnp.allclose(hid, ref_hid, rtol=1e-2, atol=1e-2)

    print("KERNEL_OK")
</pallas_src>

<mosaic_0001>
module attributes {stable_mosaic.version = 11 : i64} {
  func.func @sentence_encoder_kernel(%arg0: memref<8x8x32xf32, #tpu.memory_space<vmem>>, %arg1: memref<32x192xf32, #tpu.memory_space<vmem>>, %arg2: memref<1x192xf32, #tpu.memory_space<vmem>>, %arg3: memref<64x192xf32, #tpu.memory_space<vmem>>, %arg4: memref<1x64xf32, #tpu.memory_space<vmem>>, %arg5: memref<1x64xf32, #tpu.memory_space<vmem>>, %arg6: memref<1x64xf32, #tpu.memory_space<vmem>>, %arg7: memref<64x32xf32, #tpu.memory_space<vmem>>, %arg8: memref<1x32xf32, #tpu.memory_space<vmem>>, %arg9: memref<8x8x32xf32, #tpu.memory_space<vmem>>, %arg10: memref<2x8x32xf32, #tpu.memory_space<vmem>>, %arg11: memref<8x8x192xf32, #tpu.memory_space<vmem>>, %arg12: memref<8x8x64xf32, #tpu.memory_space<vmem>>) attributes {dimension_semantics = [], scalar_prefetch = 0 : i64, scratch_operands = 2 : i64, tpu.core_type = #tpu.core_type<tc>} {
    %c0 = arith.constant 0 : index
    %c0_0 = arith.constant 0 : index
    %c0_1 = arith.constant 0 : index
    %0 = vector.load %arg0[%c0, %c0_0, %c0_1] : memref<8x8x32xf32, #tpu.memory_space<vmem>>, vector<8x8x32xf32>
    %1 = vector.shape_cast %0 : vector<8x8x32xf32> to vector<64x32xf32>
    %c0_2 = arith.constant 0 : index
    %c0_3 = arith.constant 0 : index
    %2 = vector.load %arg1[%c0_2, %c0_3] : memref<32x192xf32, #tpu.memory_space<vmem>>, vector<32x192xf32>
    %cst = arith.constant dense<0.000000e+00> : vector<64x192xf32>
    %3 = tpu.matmul %1, %2, %cst {dimension_numbers = #tpu.dot_dimension_numbers<[1], [0], [0], [1], [0, 0, 1, 1], [], []>} : vector<64x32xf32>, vector<32x192xf32>, vector<64x192xf32> -> vector<64x192xf32>
    %c0_4 = arith.constant 0 : index
    %c0_5 = arith.constant 0 : index
    %4 = vector.load %arg2[%c0_4, %c0_5] : memref<1x192xf32, #tpu.memory_space<vmem>>, vector<1x192xf32>
    %5 = vector.broadcast %4 : vector<1x192xf32> to vector<64x192xf32>
    %6 = arith.addf %3, %5 : vector<64x192xf32>
    %7 = vector.shape_cast %6 : vector<64x192xf32> to vector<8x8x192xf32>
    %c0_6 = arith.constant 0 : index
    %c0_7 = arith.constant 0 : index
    %c0_8 = arith.constant 0 : index
    %8 = vector.load %arg11[%c0_6, %c0_7, %c0_8] : memref<8x8x192xf32, #tpu.memory_space<vmem>>, vector<8x8x192xf32>
    tpu.vector_store %arg11[%c0_6, %c0_7, %c0_8], %7 {strides = array<i32>} : memref<8x8x192xf32, #tpu.memory_space<vmem>>, vector<8x8x192xf32>,
    %c0_9 = arith.constant 0 : index
    %c0_10 = arith.constant 0 : index
    %9 = vector.load %arg4[%c0_9, %c0_10] : memref<1x64xf32, #tpu.memory_space<vmem>>, vector<1x64xf32>
    %10 = vector.shape_cast %9 : vector<1x64xf32> to vector<1x64xf32>
    %11 = vector.broadcast %10 : vector<1x64xf32> to vector<8x64xf32>
    %cst_11 = arith.constant 0.000000e+00 : f32
    %12 = vector.broadcast %cst_11 : f32 to vector<8x64xf32>
    %c0_i32 = arith.constant 0 : i32
    %c7_i32 = arith.constant 7 : i32
    %13 = arith.subi %c7_i32, %c0_i32 : i32
    %14 = arith.index_cast %c0_i32 : i32 to index
    %c0_12 = arith.constant 0 : index
    %c0_13 = arith.constant 0 : index
    %15 = vector.load %arg11[%14, %c0_12, %c0_13] : memref<8x8x192xf32, #tpu.memory_space<vmem>>, vector<1x8x192xf32>
    %16 = vector.shape_cast %15 : vector<1x8x192xf32> to vector<8x192xf32>
    %c0_14 = arith.constant 0 : index
    %c0_15 = arith.constant 0 : index
    %17 = vector.load %arg3[%c0_14, %c0_15] : memref<64x192xf32, #tpu.memory_space<vmem>>, vector<64x192xf32>
    %cst_16 = arith.constant dense<0.000000e+00> : vector<8x192xf32>
    %18 = tpu.matmul %12, %17, %cst_16 {dimension_numbers = #tpu.dot_dimension_numbers<[1], [0], [0], [1], [0, 0, 1, 1], [], []>} : vector<8x64xf32>, vector<64x192xf32>, vector<8x192xf32> -> vector<8x192xf32>
    %19 = vector.extract_strided_slice %16 {offsets = [0, 0], sizes = [8, 64], strides = [1, 1]} : vector<8x192xf32> to vector<8x64xf32>
    %20 = vector.extract_strided_slice %18 {offsets = [0, 0], sizes = [8, 64], strides = [1, 1]} : vector<8x192xf32> to vector<8x64xf32>
    %21 = arith.addf %19, %20 : vector<8x64xf32>
    %22 = arith.negf %21 : vector<8x64xf32>
    %23 = math.exp %22 : vector<8x64xf32>
    %cst_17 = arith.constant 1.000000e+00 : f32
    %24 = vector.broadcast %cst_17 : f32 to vector<8x64xf32>
    %25 = arith.addf %24, %23 : vector<8x64xf32>
    %26 = arith.divf %24, %25 : vector<8x64xf32>
    %27 = vector.extract_strided_slice %16 {offsets = [0, 64], sizes = [8, 64], strides = [1, 1]} : vector<8x192xf32> to vector<8x64xf32>
    %28 = vector.extract_strided_slice %18 {offsets = [0, 64], sizes = [8, 64], strides = [1, 1]} : vector<8x192xf32> to vector<8x64xf32>
    %29 = arith.addf %27, %28 : vector<8x64xf32>
    %30 = arith.negf %29 : vector<8x64xf32>
    %31 = math.exp %30 : vector<8x64xf32>
    %cst_18 = arith.constant 1.000000e+00 : f32
    %32 = vector.broadcast %cst_18 : f32 to vector<8x64xf32>
    %33 = arith.addf %32, %31 : vector<8x64xf32>
    %34 = arith.divf %32, %33 : vector<8x64xf32>
    %35 = vector.extract_strided_slice %16 {offsets = [0, 128], sizes = [8, 64], strides = [1, 1]} : vector<8x192xf32> to vector<8x64xf32>
    %36 = vector.extract_strided_slice %18 {offsets = [0, 128], sizes = [8, 64], strides = [1, 1]} : vector<8x192xf32> to vector<8x64xf32>
    %37 = arith.addf %36, %11 : vector<8x64xf32>
    %38 = arith.mulf %26, %37 : vector<8x64xf32>
    %39 = arith.addf %35, %38 : vector<8x64xf32>
    %40 = math.tanh %39 : vector<8x64xf32>
    %cst_19 = arith.constant 1.000000e+00 : f32
    %41 = vector.broadcast %cst_19 : f32 to vector<8x64xf32>
    %42 = arith.subf %41, %34 : vector<8x64xf32>
    %43 = arith.mulf %42, %40 : vector<8x64xf32>
    %44 = arith.mulf %34, %12 : vector<8x64xf32>
    %45 = arith.addf %43, %44 : vector<8x64xf32>
    %46 = vector.extract_strided_slice %45 {offsets = [0, 0], sizes = [8, 32], strides = [1, 1]} : vector<8x64xf32> to vector<8x32xf32>
    %47 = arith.index_cast %c0_i32 : i32 to index
    %c0_20 = arith.constant 0 : index
    %c0_21 = arith.constant 0 : index
    %48 = vector.load %arg12[%47, %c0_20, %c0_21] : memref<8x8x64xf32, #tpu.memory_space<vmem>>, vector<1x8x32xf32>
    %49 = vector.shape_cast %48 : vector<1x8x32xf32> to vector<8x32xf32>
    %50 = vector.shape_cast %46 : vector<8x32xf32> to vector<1x8x32xf32>
    tpu.vector_store %arg12[%47, %c0_20, %c0_21], %50 {strides = array<i32>} : memref<8x8x64xf32, #tpu.memory_space<vmem>>, vector<1x8x32xf32>,
    %51 = vector.extract_strided_slice %45 {offsets = [0, 32], sizes = [8, 32], strides = [1, 1]} : vector<8x64xf32> to vector<8x32xf32>
    %52 = arith.index_cast %13 : i32 to index
    %c0_22 = arith.constant 0 : index
    %c32 = arith.constant 32 : index
    %53 = vector.load %arg12[%52, %c0_22, %c32] : memref<8x8x64xf32, #tpu.memory_space<vmem>>, vector<1x8x32xf32>
    %54 = vector.shape_cast %53 : vector<1x8x32xf32> to vector<8x32xf32>
    %55 = vector.shape_cast %51 : vector<8x32xf32> to vector<1x8x32xf32>
    tpu.vector_store %arg12[%52, %c0_22, %c32], %55 {strides = array<i32>} : memref<8x8x64xf32, #tpu.memory_space<vmem>>, vector<1x8x32xf32>,
    %c1_i32 = arith.constant 1 : i32
    %c7_i32_23 = arith.constant 7 : i32
    %56 = arith.subi %c7_i32_23, %c1_i32 : i32
    %57 = arith.index_cast %c1_i32 : i32 to index
    %c0_24 = arith.constant 0 : index
    %c0_25 = arith.constant 0 : index
    %58 = vector.load %arg11[%57, %c0_24, %c0_25] : memref<8x8x192xf32, #tpu.memory_space<vmem>>, vector<1x8x192xf32>
    %59 = vector.shape_cast %58 : vector<1x8x192xf32> to vector<8x192xf32>
    %c0_26 = arith.constant 0 : index
    %c0_27 = arith.constant 0 : index
    %60 = vector.load %arg3[%c0_26, %c0_27] : memref<64x192xf32, #tpu.memory_space<vmem>>, vector<64x192xf32>
    %cst_28 = arith.constant dense<0.000000e+00> : vector<8x192xf32>
    %61 = tpu.matmul %45, %60, %cst_28 {dimension_numbers = #tpu.dot_dimension_numbers<[1], [0], [0], [1], [0, 0, 1, 1], [], []>} : vector<8x64xf32>, vector<64x192xf32>, vector<8x192xf32> -> vector<8x192xf32>
    %62 = vector.extract_strided_slice %59 {offsets = [0, 0], sizes = [8, 64], strides = [1, 1]} : vector<8x192xf32> to vector<8x64xf32>
    %63 = vector.extract_strided_slice %61 {offsets = [0, 0], sizes = [8, 64], strides = [1, 1]} : vector<8x192xf32> to vector<8x64xf32>
    %64 = arith.addf %62, %63 : vector<8x64xf32>
    %65 = arith.negf %64 : vector<8x64xf32>
    %66 = math.exp %65 : vector<8x64xf32>
    %cst_29 = arith.constant 1.000000e+00 : f32
    %67 = vector.broadcast %cst_29 : f32 to vector<8x64xf32>
    %68 = arith.addf %67, %66 : vector<8x64xf32>
    %69 = arith.divf %67, %68 : vector<8x64xf32>
    %70 = vector.extract_strided_slice %59 {offsets = [0, 64], sizes = [8, 64], strides = [1, 1]} : vector<8x192xf32> to vector<8x64xf32>
    %71 = vector.extract_strided_slice %61 {offsets = [0, 64], sizes = [8, 64], strides = [1, 1]} : vector<8x192xf32> to vector<8x64xf32>
    %72 = arith.addf %70, %71 : vector<8x64xf32>
    %73 = arith.negf %72 : vector<8x64xf32>
    %74 = math.exp %73 : vector<8x64xf32>
    %cst_30 = arith.constant 1.000000e+00 : f32
    %75 = vector.broadcast %cst_30 : f32 to vector<8x64xf32>
    %76 = arith.addf %75, %74 : vector<8x64xf32>
    %77 = arith.divf %75, %76 : vector<8x64xf32>
    %78 = vector.extract_strided_slice %59 {offsets = [0, 128], sizes = [8, 64], strides = [1, 1]} : vector<8x192xf32> to vector<8x64xf32>
    %79 = vector.extract_strided_slice %61 {offsets = [0, 128], sizes = [8, 64], strides = [1, 1]} : vector<8x192xf32> to vector<8x64xf32>
    %80 = arith.addf %79, %11 : vector<8x64xf32>
    %81 = arith.mulf %69, %80 : vector<8x64xf32>
    %82 = arith.addf %78, %81 : vector<8x64xf32>
    %83 = math.tanh %82 : vector<8x64xf32>
    %cst_31 = arith.constant 1.000000e+00 : f32
    %84 = vector.broadcast %cst_31 : f32 to vector<8x64xf32>
    %85 = arith.subf %84, %77 : vector<8x64xf32>
    %86 = arith.mulf %85, %83 : vector<8x64xf32>
    %87 = arith.mulf %77, %45 : vector<8x64xf32>
    %88 = arith.addf %86, %87 : vector<8x64xf32>
    %89 = vector.extract_strided_slice %88 {offsets = [0, 0], sizes = [8, 32], strides = [1, 1]} : vector<8x64xf32> to vector<8x32xf32>
    %90 = arith.index_cast %c1_i32 : i32 to index
    %c0_32 = arith.constant 0 : index
    %c0_33 = arith.constant 0 : index
    %91 = vector.load %arg12[%90, %c0_32, %c0_33] : memref<8x8x64xf32, #tpu.memory_space<vmem>>, vector<1x8x32xf32>
    %92 = vector.shape_cast %91 : vector<1x8x32xf32> to vector<8x32xf32>
    %93 = vector.shape_cast %89 : vector<8x32xf32> to vector<1x8x32xf32>
    tpu.vector_store %arg12[%90, %c0_32, %c0_33], %93 {strides = array<i32>} : memref<8x8x64xf32, #tpu.memory_space<vmem>>, vector<1x8x32xf32>,
    %94 = vector.extract_strided_slice %88 {offsets = [0, 32], sizes = [8, 32], strides = [1, 1]} : vector<8x64xf32> to vector<8x32xf32>
    %95 = arith.index_cast %56 : i32 to index
    %c0_34 = arith.constant 0 : index
    %c32_35 = arith.constant 32 : index
    %96 = vector.load %arg12[%95, %c0_34, %c32_35] : memref<8x8x64xf32, #tpu.memory_space<vmem>>, vector<1x8x32xf32>
    %97 = vector.shape_cast %96 : vector<1x8x32xf32> to vector<8x32xf32>
    %98 = vector.shape_cast %94 : vector<8x32xf32> to vector<1x8x32xf32>
    tpu.vector_store %arg12[%95, %c0_34, %c32_35], %98 {strides = array<i32>} : memref<8x8x64xf32, #tpu.memory_space<vmem>>, vector<1x8x32xf32>,
    %c2_i32 = arith.constant 2 : i32
    %c7_i32_36 = arith.constant 7 : i32
    %99 = arith.subi %c7_i32_36, %c2_i32 : i32
    %100 = arith.index_cast %c2_i32 : i32 to index
    %c0_37 = arith.constant 0 : index
    %c0_38 = arith.constant 0 : index
    %101 = vector.load %arg11[%100, %c0_37, %c0_38] : memref<8x8x192xf32, #tpu.memory_space<vmem>>, vector<1x8x192xf32>
    %102 = vector.shape_cast %101 : vector<1x8x192xf32> to vector<8x192xf32>
    %c0_39 = arith.constant 0 : index
    %c0_40 = arith.constant 0 : index
    %103 = vector.load %arg3[%c0_39, %c0_40] : memref<64x192xf32, #tpu.memory_space<vmem>>, vector<64x192xf32>
    %cst_41 = arith.constant dense<0.000000e+00> : vector<8x192xf32>
    %104 = tpu.matmul %88, %103, %cst_41 {dimension_numbers = #tpu.dot_dimension_numbers<[1], [0], [0], [1], [0, 0, 1, 1], [], []>} : vector<8x64xf32>, vector<64x192xf32>, vector<8x192xf32> -> vector<8x192xf32>
    %105 = vector.extract_strided_slice %102 {offsets = [0, 0], sizes = [8, 64], strides = [1, 1]} : vector<8x192xf32> to vector<8x64xf32>
    %106 = vector.extract_strided_slice %104 {offsets = [0, 0], sizes = [8, 64], strides = [1, 1]} : vector<8x192xf32> to vector<8x64xf32>
    %107 = arith.addf %105, %106 : vector<8x64xf32>
    %108 = arith.negf %107 : vector<8x64xf32>
    %109 = math.exp %108 : vector<8x64xf32>
    %cst_42 = arith.constant 1.000000e+00 : f32
    %110 = vector.broadcast %cst_42 : f32 to vector<8x64xf32>
    %111 = arith.addf %110, %109 : vector<8x64xf32>
    %112 = arith.divf %110, %111 : vector<8x64xf32>
    %113 = vector.extract_strided_slice %102 {offsets = [0, 64], sizes = [8, 64], strides = [1, 1]} : vector<8x192xf32> to vector<8x64xf32>
    %114 = vector.extract_strided_slice %104 {offsets = [0, 64], sizes = [8, 64], strides = [1, 1]} : vector<8x192xf32> to vector<8x64xf32>
    %115 = arith.addf %113, %114 : vector<8x64xf32>
    %116 = arith.negf %115 : vector<8x64xf32>
    %117 = math.exp %116 : vector<8x64xf32>
    %cst_43 = arith.constant 1.000000e+00 : f32
    %118 = vector.broadcast %cst_43 : f32 to vector<8x64xf32>
    %119 = arith.addf %118, %117 : vector<8x64xf32>
    %120 = arith.divf %118, %119 : vector<8x64xf32>
    %121 = vector.extract_strided_slice %102 {offsets = [0, 128], sizes = [8, 64], strides = [1, 1]} : vector<8x192xf32> to vector<8x64xf32>
    %122 = vector.extract_strided_slice %104 {offsets = [0, 128], sizes = [8, 64], strides = [1, 1]} : vector<8x192xf32> to vector<8x64xf32>
    %123 = arith.addf %122, %11 : vector<8x64xf32>
    %124 = arith.mulf %112, %123 : vector<8x64xf32>
    %125 = arith.addf %121, %124 : vector<8x64xf32>
    %126 = math.tanh %125 : vector<8x64xf32>
    %cst_44 = arith.constant 1.000000e+00 : f32
    %127 = vector.broadcast %cst_44 : f32 to vector<8x64xf32>
    %128 = arith.subf %127, %120 : vector<8x64xf32>
    %129 = arith.mulf %128, %126 : vector<8x64xf32>
    %130 = arith.mulf %120, %88 : vector<8x64xf32>
    %131 = arith.addf %129, %130 : vector<8x64xf32>
    %132 = vector.extract_strided_slice %131 {offsets = [0, 0], sizes = [8, 32], strides = [1, 1]} : vector<8x64xf32> to vector<8x32xf32>
    %133 = arith.index_cast %c2_i32 : i32 to index
    %c0_45 = arith.constant 0 : index
    %c0_46 = arith.constant 0 : index
    %134 = vector.load %arg12[%133, %c0_45, %c0_46] : memref<8x8x64xf32, #tpu.memory_space<vmem>>, vector<1x8x32xf32>
    %135 = vector.shape_cast %134 : vector<1x8x32xf32> to vector<8x32xf32>
    %136 = vector.shape_cast %132 : vector<8x32xf32> to vector<1x8x32xf32>
    tpu.vector_store %arg12[%133, %c0_45, %c0_46], %136 {strides = array<i32>} : memref<8x8x64xf32, #tpu.memory_space<vmem>>, vector<1x8x32xf32>,
    %137 = vector.extract_strided_slice %131 {offsets = [0, 32], sizes = [8, 32], strides = [1, 1]} : vector<8x64xf32> to vector<8x32xf32>
    %138 = arith.index_cast %99 : i32 to index
    %c0_47 = arith.constant 0 : index
    %c32_48 = arith.constant 32 : index
    %139 = vector.load %arg12[%138, %c0_47, %c32_48] : memref<8x8x64xf32, #tpu.memory_space<vmem>>, vector<1x8x32xf32>
    %140 = vector.shape_cast %139 : vector<1x8x32xf32> to vector<8x32xf32>
    %141 = vector.shape_cast %137 : vector<8x32xf32> to vector<1x8x32xf32>
    tpu.vector_store %arg12[%138, %c0_47, %c32_48], %141 {strides = array<i32>} : memref<8x8x64xf32, #tpu.memory_space<vmem>>, vector<1x8x32xf32>,
    %c3_i32 = arith.constant 3 : i32
    %c7_i32_49 = arith.constant 7 : i32
    %142 = arith.subi %c7_i32_49, %c3_i32 : i32
    %143 = arith.index_cast %c3_i32 : i32 to index
    %c0_50 = arith.constant 0 : index
    %c0_51 = arith.constant 0 : index
    %144 = vector.load %arg11[%143, %c0_50, %c0_51] : memref<8x8x192xf32, #tpu.memory_space<vmem>>, vector<1x8x192xf32>
    %145 = vector.shape_cast %144 : vector<1x8x192xf32> to vector<8x192xf32>
    %c0_52 = arith.constant 0 : index
    %c0_53 = arith.constant 0 : index
    %146 = vector.load %arg3[%c0_52, %c0_53] : memref<64x192xf32, #tpu.memory_space<vmem>>, vector<64x192xf32>
    %cst_54 = arith.constant dense<0.000000e+00> : vector<8x192xf32>
    %147 = tpu.matmul %131, %146, %cst_54 {dimension_numbers = #tpu.dot_dimension_numbers<[1], [0], [0], [1], [0, 0, 1, 1], [], []>} : vector<8x64xf32>, vector<64x192xf32>, vector<8x192xf32> -> vector<8x192xf32>
    %148 = vector.extract_strided_slice %145 {offsets = [0, 0], sizes = [8, 64], strides = [1, 1]} : vector<8x192xf32> to vector<8x64xf32>
    %149 = vector.extract_strided_slice %147 {offsets = [0, 0], sizes = [8, 64], strides = [1, 1]} : vector<8x192xf32> to vector<8x64xf32>
    %150 = arith.addf %148, %149 : vector<8x64xf32>
    %151 = arith.negf %150 : vector<8x64xf32>
    %152 = math.exp %151 : vector<8x64xf32>
    %cst_55 = arith.constant 1.000000e+00 : f32
    %153 = vector.broadcast %cst_55 : f32 to vector<8x64xf32>
    %154 = arith.addf %153, %152 : vector<8x64xf32>
    %155 = arith.divf %153, %154 : vector<8x64xf32>
    %156 = vector.extract_strided_slice %145 {offsets = [0, 64], sizes = [8, 64], strides = [1, 1]} : vector<8x192xf32> to vector<8x64xf32>
    %157 = vector.extract_strided_slice %147 {offsets = [0, 64], sizes = [8, 64], strides = [1, 1]} : vector<8x192xf32> to vector<8x64xf32>
    %158 = arith.addf %156, %157 : vector<8x64xf32>
    %159 = arith.negf %158 : vector<8x64xf32>
    %160 = math.exp %159 : vector<8x64xf32>
    %cst_56 = arith.constant 1.000000e+00 : f32
    %161 = vector.broadcast %cst_56 : f32 to vector<8x64xf32>
    %162 = arith.addf %161, %160 : vector<8x64xf32>
    %163 = arith.divf %161, %162 : vector<8x64xf32>
    %164 = vector.extract_strided_slice %145 {offsets = [0, 128], sizes = [8, 64], strides = [1, 1]} : vector<8x192xf32> to vector<8x64xf32>
    %165 = vector.extract_strided_slice %147 {offsets = [0, 128], sizes = [8, 64], strides = [1, 1]} : vector<8x192xf32> to vector<8x64xf32>
    %166 = arith.addf %165, %11 : vector<8x64xf32>
    %167 = arith.mulf %155, %166 : vector<8x64xf32>
    %168 = arith.addf %164, %167 : vector<8x64xf32>
    %169 = math.tanh %168 : vector<8x64xf32>
    %cst_57 = arith.constant 1.000000e+00 : f32
    %170 = vector.broadcast %cst_57 : f32 to vector<8x64xf32>
    %171 = arith.subf %170, %163 : vector<8x64xf32>
    %172 = arith.mulf %171, %169 : vector<8x64xf32>
    %173 = arith.mulf %163, %131 : vector<8x64xf32>
    %174 = arith.addf %172, %173 : vector<8x64xf32>
    %175 = vector.extract_strided_slice %174 {offsets = [0, 0], sizes = [8, 32], strides = [1, 1]} : vector<8x64xf32> to vector<8x32xf32>
    %176 = arith.index_cast %c3_i32 : i32 to index
    %c0_58 = arith.constant 0 : index
    %c0_59 = arith.constant 0 : index
    %177 = vector.load %arg12[%176, %c0_58, %c0_59] : memref<8x8x64xf32, #tpu.memory_space<vmem>>, vector<1x8x32xf32>
    %178 = vector.shape_cast %177 : vector<1x8x32xf32> to vector<8x32xf32>
    %179 = vector.shape_cast %175 : vector<8x32xf32> to vector<1x8x32xf32>
    tpu.vector_store %arg12[%176, %c0_58, %c0_59], %179 {strides = array<i32>} : memref<8x8x64xf32, #tpu.memory_space<vmem>>, vector<1x8x32xf32>,
    %180 = vector.extract_strided_slice %174 {offsets = [0, 32], sizes = [8, 32], strides = [1, 1]} : vector<8x64xf32> to vector<8x32xf32>
    %181 = arith.index_cast %142 : i32 to index
    %c0_60 = arith.constant 0 : index
    %c32_61 = arith.constant 32 : index
    %182 = vector.load %arg12[%181, %c0_60, %c32_61] : memref<8x8x64xf32, #tpu.memory_space<vmem>>, vector<1x8x32xf32>
    %183 = vector.shape_cast %182 : vector<1x8x32xf32> to vector<8x32xf32>
    %184 = vector.shape_cast %180 : vector<8x32xf32> to vector<1x8x32xf32>
    tpu.vector_store %arg12[%181, %c0_60, %c32_61], %184 {strides = array<i32>} : memref<8x8x64xf32, #tpu.memory_space<vmem>>, vector<1x8x32xf32>,
    %c4_i32 = arith.constant 4 : i32
    %c7_i32_62 = arith.constant 7 : i32
    %185 = arith.subi %c7_i32_62, %c4_i32 : i32
    %186 = arith.index_cast %c4_i32 : i32 to index
    %c0_63 = arith.constant 0 : index
    %c0_64 = arith.constant 0 : index
    %187 = vector.load %arg11[%186, %c0_63, %c0_64] : memref<8x8x192xf32, #tpu.memory_space<vmem>>, vector<1x8x192xf32>
    %188 = vector.shape_cast %187 : vector<1x8x192xf32> to vector<8x192xf32>
    %c0_65 = arith.constant 0 : index
    %c0_66 = arith.constant 0 : index
    %189 = vector.load %arg3[%c0_65, %c0_66] : memref<64x192xf32, #tpu.memory_space<vmem>>, vector<64x192xf32>
    %cst_67 = arith.constant dense<0.000000e+00> : vector<8x192xf32>
    %190 = tpu.matmul %174, %189, %cst_67 {dimension_numbers = #tpu.dot_dimension_numbers<[1], [0], [0], [1], [0, 0, 1, 1], [], []>} : vector<8x64xf32>, vector<64x192xf32>, vector<8x192xf32> -> vector<8x192xf32>
    %191 = vector.extract_strided_slice %188 {offsets = [0, 0], sizes = [8, 64], strides = [1, 1]} : vector<8x192xf32> to vector<8x64xf32>
    %192 = vector.extract_strided_slice %190 {offsets = [0, 0], sizes = [8, 64], strides = [1, 1]} : vector<8x192xf32> to vector<8x64xf32>
    %193 = arith.addf %191, %192 : vector<8x64xf32>
    %194 = arith.negf %193 : vector<8x64xf32>
    %195 = math.exp %194 : vector<8x64xf32>
    %cst_68 = arith.constant 1.000000e+00 : f32
    %196 = vector.broadcast %cst_68 : f32 to vector<8x64xf32>
    %197 = arith.addf %196, %195 : vector<8x64xf32>
    %198 = arith.divf %196, %197 : vector<8x64xf32>
    %199 = vector.extract_strided_slice %188 {offsets = [0, 64], sizes = [8, 64], strides = [1, 1]} : vector<8x192xf32> to vector<8x64xf32>
    %200 = vector.extract_strided_slice %190 {offsets = [0, 64], sizes = [8, 64], strides = [1, 1]} : vector<8x192xf32> to vector<8x64xf32>
    %201 = arith.addf %199, %200 : vector<8x64xf32>
    %202 = arith.negf %201 : vector<8x64xf32>
    %203 = math.exp %202 : vector<8x64xf32>
    %cst_69 = arith.constant 1.000000e+00 : f32
    %204 = vector.broadcast %cst_69 : f32 to vector<8x64xf32>
    %205 = arith.addf %204, %203 : vector<8x64xf32>
    %206 = arith.divf %204, %205 : vector<8x64xf32>
    %207 = vector.extract_strided_slice %188 {offsets = [0, 128], sizes = [8, 64], strides = [1, 1]} : vector<8x192xf32> to vector<8x64xf32>
    %208 = vector.extract_strided_slice %190 {offsets = [0, 128], sizes = [8, 64], strides = [1, 1]} : vector<8x192xf32> to vector<8x64xf32>
    %209 = arith.addf %208, %11 : vector<8x64xf32>
    %210 = arith.mulf %198, %209 : vector<8x64xf32>
    %211 = arith.addf %207, %210 : vector<8x64xf32>
    %212 = math.tanh %211 : vector<8x64xf32>
    %cst_70 = arith.constant 1.000000e+00 : f32
    %213 = vector.broadcast %cst_70 : f32 to vector<8x64xf32>
    %214 = arith.subf %213, %206 : vector<8x64xf32>
    %215 = arith.mulf %214, %212 : vector<8x64xf32>
    %216 = arith.mulf %206, %174 : vector<8x64xf32>
    %217 = arith.addf %215, %216 : vector<8x64xf32>
    %218 = vector.extract_strided_slice %217 {offsets = [0, 0], sizes = [8, 32], strides = [1, 1]} : vector<8x64xf32> to vector<8x32xf32>
    %219 = arith.index_cast %c4_i32 : i32 to index
    %c0_71 = arith.constant 0 : index
    %c0_72 = arith.constant 0 : index
    %220 = vector.load %arg12[%219, %c0_71, %c0_72] : memref<8x8x64xf32, #tpu.memory_space<vmem>>, vector<1x8x32xf32>
    %221 = vector.shape_cast %220 : vector<1x8x32xf32> to vector<8x32xf32>
    %222 = vector.shape_cast %218 : vector<8x32xf32> to vector<1x8x32xf32>
    tpu.vector_store %arg12[%219, %c0_71, %c0_72], %222 {strides = array<i32>} : memref<8x8x64xf32, #tpu.memory_space<vmem>>, vector<1x8x32xf32>,
    %223 = vector.extract_strided_slice %217 {offsets = [0, 32], sizes = [8, 32], strides = [1, 1]} : vector<8x64xf32> to vector<8x32xf32>
    %224 = arith.index_cast %185 : i32 to index
    %c0_73 = arith.constant 0 : index
    %c32_74 = arith.constant 32 : index
    %225 = vector.load %arg12[%224, %c0_73, %c32_74] : memref<8x8x64xf32, #tpu.memory_space<vmem>>, vector<1x8x32xf32>
    %226 = vector.shape_cast %225 : vector<1x8x32xf32> to vector<8x32xf32>
    %227 = vector.shape_cast %223 : vector<8x32xf32> to vector<1x8x32xf32>
    tpu.vector_store %arg12[%224, %c0_73, %c32_74], %227 {strides = array<i32>} : memref<8x8x64xf32, #tpu.memory_space<vmem>>, vector<1x8x32xf32>,
    %c5_i32 = arith.constant 5 : i32
    %c7_i32_75 = arith.constant 7 : i32
    %228 = arith.subi %c7_i32_75, %c5_i32 : i32
    %229 = arith.index_cast %c5_i32 : i32 to index
    %c0_76 = arith.constant 0 : index
    %c0_77 = arith.constant 0 : index
    %230 = vector.load %arg11[%229, %c0_76, %c0_77] : memref<8x8x192xf32, #tpu.memory_space<vmem>>, vector<1x8x192xf32>
    %231 = vector.shape_cast %230 : vector<1x8x192xf32> to vector<8x192xf32>
    %c0_78 = arith.constant 0 : index
    %c0_79 = arith.constant 0 : index
    %232 = vector.load %arg3[%c0_78, %c0_79] : memref<64x192xf32, #tpu.memory_space<vmem>>, vector<64x192xf32>
    %cst_80 = arith.constant dense<0.000000e+00> : vector<8x192xf32>
    %233 = tpu.matmul %217, %232, %cst_80 {dimension_numbers = #tpu.dot_dimension_numbers<[1], [0], [0], [1], [0, 0, 1, 1], [], []>} : vector<8x64xf32>, vector<64x192xf32>, vector<8x192xf32> -> vector<8x192xf32>
    %234 = vector.extract_strided_slice %231 {offsets = [0, 0], sizes = [8, 64], strides = [1, 1]} : vector<8x192xf32> to vector<8x64xf32>
    %235 = vector.extract_strided_slice %233 {offsets = [0, 0], sizes = [8, 64], strides = [1, 1]} : vector<8x192xf32> to vector<8x64xf32>
    %236 = arith.addf %234, %235 : vector<8x64xf32>
    %237 = arith.negf %236 : vector<8x64xf32>
    %238 = math.exp %237 : vector<8x64xf32>
    %cst_81 = arith.constant 1.000000e+00 : f32
    %239 = vector.broadcast %cst_81 : f32 to vector<8x64xf32>
    %240 = arith.addf %239, %238 : vector<8x64xf32>
    %241 = arith.divf %239, %240 : vector<8x64xf32>
    %242 = vector.extract_strided_slice %231 {offsets = [0, 64], sizes = [8, 64], strides = [1, 1]} : vector<8x192xf32> to vector<8x64xf32>
    %243 = vector.extract_strided_slice %233 {offsets = [0, 64], sizes = [8, 64], strides = [1, 1]} : vector<8x192xf32> to vector<8x64xf32>
    %244 = arith.addf %242, %243 : vector<8x64xf32>
    %245 = arith.negf %244 : vector<8x64xf32>
    %246 = math.exp %245 : vector<8x64xf32>
    %cst_82 = arith.constant 1.000000e+00 : f32
    %247 = vector.broadcast %cst_82 : f32 to vector<8x64xf32>
    %248 = arith.addf %247, %246 : vector<8x64xf32>
    %249 = arith.divf %247, %248 : vector<8x64xf32>
    %250 = vector.extract_strided_slice %231 {offsets = [0, 128], sizes = [8, 64], strides = [1, 1]} : vector<8x192xf32> to vector<8x64xf32>
    %251 = vector.extract_strided_slice %233 {offsets = [0, 128], sizes = [8, 64], strides = [1, 1]} : vector<8x192xf32> to vector<8x64xf32>
    %252 = arith.addf %251, %11 : vector<8x64xf32>
    %253 = arith.mulf %241, %252 : vector<8x64xf32>
    %254 = arith.addf %250, %253 : vector<8x64xf32>
    %255 = math.tanh %254 : vector<8x64xf32>
    %cst_83 = arith.constant 1.000000e+00 : f32
    %256 = vector.broadcast %cst_83 : f32 to vector<8x64xf32>
    %257 = arith.subf %256, %249 : vector<8x64xf32>
    %258 = arith.mulf %257, %255 : vector<8x64xf32>
    %259 = arith.mulf %249, %217 : vector<8x64xf32>
    %260 = arith.addf %258, %259 : vector<8x64xf32>
    %261 = vector.extract_strided_slice %260 {offsets = [0, 0], sizes = [8, 32], strides = [1, 1]} : vector<8x64xf32> to vector<8x32xf32>
    %262 = arith.index_cast %c5_i32 : i32 to index
    %c0_84 = arith.constant 0 : index
    %c0_85 = arith.constant 0 : index
    %263 = vector.load %arg12[%262, %c0_84, %c0_85] : memref<8x8x64xf32, #tpu.memory_space<vmem>>, vector<1x8x32xf32>
    %264 = vector.shape_cast %263 : vector<1x8x32xf32> to vector<8x32xf32>
    %265 = vector.shape_cast %261 : vector<8x32xf32> to vector<1x8x32xf32>
    tpu.vector_store %arg12[%262, %c0_84, %c0_85], %265 {strides = array<i32>} : memref<8x8x64xf32, #tpu.memory_space<vmem>>, vector<1x8x32xf32>,
    %266 = vector.extract_strided_slice %260 {offsets = [0, 32], sizes = [8, 32], strides = [1, 1]} : vector<8x64xf32> to vector<8x32xf32>
    %267 = arith.index_cast %228 : i32 to index
    %c0_86 = arith.constant 0 : index
    %c32_87 = arith.constant 32 : index
    %268 = vector.load %arg12[%267, %c0_86, %c32_87] : memref<8x8x64xf32, #tpu.memory_space<vmem>>, vector<1x8x32xf32>
    %269 = vector.shape_cast %268 : vector<1x8x32xf32> to vector<8x32xf32>
    %270 = vector.shape_cast %266 : vector<8x32xf32> to vector<1x8x32xf32>
    tpu.vector_store %arg12[%267, %c0_86, %c32_87], %270 {strides = array<i32>} : memref<8x8x64xf32, #tpu.memory_space<vmem>>, vector<1x8x32xf32>,
    %c6_i32 = arith.constant 6 : i32
    %c7_i32_88 = arith.constant 7 : i32
    %271 = arith.subi %c7_i32_88, %c6_i32 : i32
    %272 = arith.index_cast %c6_i32 : i32 to index
    %c0_89 = arith.constant 0 : index
    %c0_90 = arith.constant 0 : index
    %273 = vector.load %arg11[%272, %c0_89, %c0_90] : memref<8x8x192xf32, #tpu.memory_space<vmem>>, vector<1x8x192xf32>
    %274 = vector.shape_cast %273 : vector<1x8x192xf32> to vector<8x192xf32>
    %c0_91 = arith.constant 0 : index
    %c0_92 = arith.constant 0 : index
    %275 = vector.load %arg3[%c0_91, %c0_92] : memref<64x192xf32, #tpu.memory_space<vmem>>, vector<64x192xf32>
    %cst_93 = arith.constant dense<0.000000e+00> : vector<8x192xf32>
    %276 = tpu.matmul %260, %275, %cst_93 {dimension_numbers = #tpu.dot_dimension_numbers<[1], [0], [0], [1], [0, 0, 1, 1], [], []>} : vector<8x64xf32>, vector<64x192xf32>, vector<8x192xf32> -> vector<8x192xf32>
    %277 = vector.extract_strided_slice %274 {offsets = [0, 0], sizes = [8, 64], strides = [1, 1]} : vector<8x192xf32> to vector<8x64xf32>
    %278 = vector.extract_strided_slice %276 {offsets = [0, 0], sizes = [8, 64], strides = [1, 1]} : vector<8x192xf32> to vector<8x64xf32>
    %279 = arith.addf %277, %278 : vector<8x64xf32>
    %280 = arith.negf %279 : vector<8x64xf32>
    %281 = math.exp %280 : vector<8x64xf32>
    %cst_94 = arith.constant 1.000000e+00 : f32
    %282 = vector.broadcast %cst_94 : f32 to vector<8x64xf32>
    %283 = arith.addf %282, %281 : vector<8x64xf32>
    %284 = arith.divf %282, %283 : vector<8x64xf32>
    %285 = vector.extract_strided_slice %274 {offsets = [0, 64], sizes = [8, 64], strides = [1, 1]} : vector<8x192xf32> to vector<8x64xf32>
    %286 = vector.extract_strided_slice %276 {offsets = [0, 64], sizes = [8, 64], strides = [1, 1]} : vector<8x192xf32> to vector<8x64xf32>
    %287 = arith.addf %285, %286 : vector<8x64xf32>
    %288 = arith.negf %287 : vector<8x64xf32>
    %289 = math.exp %288 : vector<8x64xf32>
    %cst_95 = arith.constant 1.000000e+00 : f32
    %290 = vector.broadcast %cst_95 : f32 to vector<8x64xf32>
    %291 = arith.addf %290, %289 : vector<8x64xf32>
    %292 = arith.divf %290, %291 : vector<8x64xf32>
    %293 = vector.extract_strided_slice %274 {offsets = [0, 128], sizes = [8, 64], strides = [1, 1]} : vector<8x192xf32> to vector<8x64xf32>
    %294 = vector.extract_strided_slice %276 {offsets = [0, 128], sizes = [8, 64], strides = [1, 1]} : vector<8x192xf32> to vector<8x64xf32>
    %295 = arith.addf %294, %11 : vector<8x64xf32>
    %296 = arith.mulf %284, %295 : vector<8x64xf32>
    %297 = arith.addf %293, %296 : vector<8x64xf32>
    %298 = math.tanh %297 : vector<8x64xf32>
    %cst_96 = arith.constant 1.000000e+00 : f32
    %299 = vector.broadcast %cst_96 : f32 to vector<8x64xf32>
    %300 = arith.subf %299, %292 : vector<8x64xf32>
    %301 = arith.mulf %300, %298 : vector<8x64xf32>
    %302 = arith.mulf %292, %260 : vector<8x64xf32>
    %303 = arith.addf %301, %302 : vector<8x64xf32>
    %304 = vector.extract_strided_slice %303 {offsets = [0, 0], sizes = [8, 32], strides = [1, 1]} : vector<8x64xf32> to vector<8x32xf32>
    %305 = arith.index_cast %c6_i32 : i32 to index
    %c0_97 = arith.constant 0 : index
    %c0_98 = arith.constant 0 : index
    %306 = vector.load %arg12[%305, %c0_97, %c0_98] : memref<8x8x64xf32, #tpu.memory_space<vmem>>, vector<1x8x32xf32>
    %307 = vector.shape_cast %306 : vector<1x8x32xf32> to vector<8x32xf32>
    %308 = vector.shape_cast %304 : vector<8x32xf32> to vector<1x8x32xf32>
    tpu.vector_store %arg12[%305, %c0_97, %c0_98], %308 {strides = array<i32>} : memref<8x8x64xf32, #tpu.memory_space<vmem>>, vector<1x8x32xf32>,
    %309 = vector.extract_strided_slice %303 {offsets = [0, 32], sizes = [8, 32], strides = [1, 1]} : vector<8x64xf32> to vector<8x32xf32>
    %310 = arith.index_cast %271 : i32 to index
    %c0_99 = arith.constant 0 : index
    %c32_100 = arith.constant 32 : index
    %311 = vector.load %arg12[%310, %c0_99, %c32_100] : memref<8x8x64xf32, #tpu.memory_space<vmem>>, vector<1x8x32xf32>
    %312 = vector.shape_cast %311 : vector<1x8x32xf32> to vector<8x32xf32>
    %313 = vector.shape_cast %309 : vector<8x32xf32> to vector<1x8x32xf32>
    tpu.vector_store %arg12[%310, %c0_99, %c32_100], %313 {strides = array<i32>} : memref<8x8x64xf32, #tpu.memory_space<vmem>>, vector<1x8x32xf32>,
    %c7_i32_101 = arith.constant 7 : i32
    %c7_i32_102 = arith.constant 7 : i32
    %314 = arith.subi %c7_i32_102, %c7_i32_101 : i32
    %315 = arith.index_cast %c7_i32_101 : i32 to index
    %c0_103 = arith.constant 0 : index
    %c0_104 = arith.constant 0 : index
    %316 = vector.load %arg11[%315, %c0_103, %c0_104] : memref<8x8x192xf32, #tpu.memory_space<vmem>>, vector<1x8x192xf32>
    %317 = vector.shape_cast %316 : vector<1x8x192xf32> to vector<8x192xf32>
    %c0_105 = arith.constant 0 : index
    %c0_106 = arith.constant 0 : index
    %318 = vector.load %arg3[%c0_105, %c0_106] : memref<64x192xf32, #tpu.memory_space<vmem>>, vector<64x192xf32>
    %cst_107 = arith.constant dense<0.000000e+00> : vector<8x192xf32>
    %319 = tpu.matmul %303, %318, %cst_107 {dimension_numbers = #tpu.dot_dimension_numbers<[1], [0], [0], [1], [0, 0, 1, 1], [], []>} : vector<8x64xf32>, vector<64x192xf32>, vector<8x192xf32> -> vector<8x192xf32>
    %320 = vector.extract_strided_slice %317 {offsets = [0, 0], sizes = [8, 64], strides = [1, 1]} : vector<8x192xf32> to vector<8x64xf32>
    %321 = vector.extract_strided_slice %319 {offsets = [0, 0], sizes = [8, 64], strides = [1, 1]} : vector<8x192xf32> to vector<8x64xf32>
    %322 = arith.addf %320, %321 : vector<8x64xf32>
    %323 = arith.negf %322 : vector<8x64xf32>
    %324 = math.exp %323 : vector<8x64xf32>
    %cst_108 = arith.constant 1.000000e+00 : f32
    %325 = vector.broadcast %cst_108 : f32 to vector<8x64xf32>
    %326 = arith.addf %325, %324 : vector<8x64xf32>
    %327 = arith.divf %325, %326 : vector<8x64xf32>
    %328 = vector.extract_strided_slice %317 {offsets = [0, 64], sizes = [8, 64], strides = [1, 1]} : vector<8x192xf32> to vector<8x64xf32>
    %329 = vector.extract_strided_slice %319 {offsets = [0, 64], sizes = [8, 64], strides = [1, 1]} : vector<8x192xf32> to vector<8x64xf32>
    %330 = arith.addf %328, %329 : vector<8x64xf32>
    %331 = arith.negf %330 : vector<8x64xf32>
    %332 = math.exp %331 : vector<8x64xf32>
    %cst_109 = arith.constant 1.000000e+00 : f32
    %333 = vector.broadcast %cst_109 : f32 to vector<8x64xf32>
    %334 = arith.addf %333, %332 : vector<8x64xf32>
    %335 = arith.divf %333, %334 : vector<8x64xf32>
    %336 = vector.extract_strided_slice %317 {offsets = [0, 128], sizes = [8, 64], strides = [1, 1]} : vector<8x192xf32> to vector<8x64xf32>
    %337 = vector.extract_strided_slice %319 {offsets = [0, 128], sizes = [8, 64], strides = [1, 1]} : vector<8x192xf32> to vector<8x64xf32>
    %338 = arith.addf %337, %11 : vector<8x64xf32>
    %339 = arith.mulf %327, %338 : vector<8x64xf32>
    %340 = arith.addf %336, %339 : vector<8x64xf32>
    %341 = math.tanh %340 : vector<8x64xf32>
    %cst_110 = arith.constant 1.000000e+00 : f32
    %342 = vector.broadcast %cst_110 : f32 to vector<8x64xf32>
    %343 = arith.subf %342, %335 : vector<8x64xf32>
    %344 = arith.mulf %343, %341 : vector<8x64xf32>
    %345 = arith.mulf %335, %303 : vector<8x64xf32>
    %346 = arith.addf %344, %345 : vector<8x64xf32>
    %347 = vector.extract_strided_slice %346 {offsets = [0, 0], sizes = [8, 32], strides = [1, 1]} : vector<8x64xf32> to vector<8x32xf32>
    %348 = arith.index_cast %c7_i32_101 : i32 to index
    %c0_111 = arith.constant 0 : index
    %c0_112 = arith.constant 0 : index
    %349 = vector.load %arg12[%348, %c0_111, %c0_112] : memref<8x8x64xf32, #tpu.memory_space<vmem>>, vector<1x8x32xf32>
    %350 = vector.shape_cast %349 : vector<1x8x32xf32> to vector<8x32xf32>
    %351 = vector.shape_cast %347 : vector<8x32xf32> to vector<1x8x32xf32>
    tpu.vector_store %arg12[%348, %c0_111, %c0_112], %351 {strides = array<i32>} : memref<8x8x64xf32, #tpu.memory_space<vmem>>, vector<1x8x32xf32>,
    %352 = vector.extract_strided_slice %346 {offsets = [0, 32], sizes = [8, 32], strides = [1, 1]} : vector<8x64xf32> to vector<8x32xf32>
    %353 = arith.index_cast %314 : i32 to index
    %c0_113 = arith.constant 0 : index
    %c32_114 = arith.constant 32 : index
    %354 = vector.load %arg12[%353, %c0_113, %c32_114] : memref<8x8x64xf32, #tpu.memory_space<vmem>>, vector<1x8x32xf32>
    %355 = vector.shape_cast %354 : vector<1x8x32xf32> to vector<8x32xf32>
    %356 = vector.shape_cast %352 : vector<8x32xf32> to vector<1x8x32xf32>
    tpu.vector_store %arg12[%353, %c0_113, %c32_114], %356 {strides = array<i32>} : memref<8x8x64xf32, #tpu.memory_space<vmem>>, vector<1x8x32xf32>,
    %c8_i32 = arith.constant 8 : i32
    %357 = vector.extract_strided_slice %346 {offsets = [0, 0], sizes = [8, 32], strides = [1, 1]} : vector<8x64xf32> to vector<8x32xf32>
    %c0_115 = arith.constant 0 : index
    %c0_116 = arith.constant 0 : index
    %c0_117 = arith.constant 0 : index
    %358 = vector.load %arg10[%c0_115, %c0_116, %c0_117] : memref<2x8x32xf32, #tpu.memory_space<vmem>>, vector<1x8x32xf32>
    %359 = vector.shape_cast %358 : vector<1x8x32xf32> to vector<8x32xf32>
    %360 = vector.shape_cast %357 : vector<8x32xf32> to vector<1x8x32xf32>
    tpu.vector_store %arg10[%c0_115, %c0_116, %c0_117], %360 {strides = array<i32>} : memref<2x8x32xf32, #tpu.memory_space<vmem>>, vector<1x8x32xf32>,
    %361 = vector.extract_strided_slice %346 {offsets = [0, 32], sizes = [8, 32], strides = [1, 1]} : vector<8x64xf32> to vector<8x32xf32>
    %c1 = arith.constant 1 : index
    %c0_118 = arith.constant 0 : index
    %c0_119 = arith.constant 0 : index
    %362 = vector.load %arg10[%c1, %c0_118, %c0_119] : memref<2x8x32xf32, #tpu.memory_space<vmem>>, vector<1x8x32xf32>
    %363 = vector.shape_cast %362 : vector<1x8x32xf32> to vector<8x32xf32>
    %364 = vector.shape_cast %361 : vector<8x32xf32> to vector<1x8x32xf32>
    tpu.vector_store %arg10[%c1, %c0_118, %c0_119], %364 {strides = array<i32>} : memref<2x8x32xf32, #tpu.memory_space<vmem>>, vector<1x8x32xf32>,
    %c0_120 = arith.constant 0 : index
    %c0_121 = arith.constant 0 : index
    %c0_122 = arith.constant 0 : index
    %365 = vector.load %arg12[%c0_120, %c0_121, %c0_122] : memref<8x8x64xf32, #tpu.memory_space<vmem>>, vector<8x8x64xf32>
    %366 = vector.shape_cast %365 : vector<8x8x64xf32> to vector<64x64xf32>
    %cst_123 = arith.constant dense<0.000000e+00> : vector<64xf32>
    %367 = vector.multi_reduction <add>, %366, %cst_123 [1] : vector<64x64xf32> to vector<64xf32>
    %368 = vector.shape_cast %367 : vector<64xf32> to vector<64x1xf32>
    %cst_124 = arith.constant 6.400000e+01 : f32
    %369 = vector.broadcast %cst_124 : f32 to vector<64x1xf32>
    %370 = arith.divf %368, %369 : vector<64x1xf32>
    %371 = vector.broadcast %370 : vector<64x1xf32> to vector<64x64xf32>
    %372 = arith.subf %366, %371 : vector<64x64xf32>
    %373 = arith.mulf %372, %372 : vector<64x64xf32>
    %cst_125 = arith.constant dense<0.000000e+00> : vector<64xf32>
    %374 = vector.multi_reduction <add>, %373, %cst_125 [1] : vector<64x64xf32> to vector<64xf32>
    %375 = vector.shape_cast %374 : vector<64xf32> to vector<64x1xf32>
    %cst_126 = arith.constant 6.400000e+01 : f32
    %376 = vector.broadcast %cst_126 : f32 to vector<64x1xf32>
    %377 = arith.divf %375, %376 : vector<64x1xf32>
    %cst_127 = arith.constant 9.99999974E-6 : f32
    %378 = vector.broadcast %cst_127 : f32 to vector<64x1xf32>
    %379 = arith.addf %377, %378 : vector<64x1xf32>
    %380 = math.rsqrt %379 : vector<64x1xf32>
    %381 = vector.broadcast %380 : vector<64x1xf32> to vector<64x64xf32>
    %382 = arith.mulf %372, %381 : vector<64x64xf32>
    %c0_128 = arith.constant 0 : index
    %c0_129 = arith.constant 0 : index
    %383 = vector.load %arg5[%c0_128, %c0_129] : memref<1x64xf32, #tpu.memory_space<vmem>>, vector<1x64xf32>
    %384 = vector.broadcast %383 : vector<1x64xf32> to vector<64x64xf32>
    %385 = arith.mulf %382, %384 : vector<64x64xf32>
    %c0_130 = arith.constant 0 : index
    %c0_131 = arith.constant 0 : index
    %386 = vector.load %arg6[%c0_130, %c0_131] : memref<1x64xf32, #tpu.memory_space<vmem>>, vector<1x64xf32>
    %387 = vector.broadcast %386 : vector<1x64xf32> to vector<64x64xf32>
    %388 = arith.addf %385, %387 : vector<64x64xf32>
    %c0_132 = arith.constant 0 : index
    %c0_133 = arith.constant 0 : index
    %389 = vector.load %arg7[%c0_132, %c0_133] : memref<64x32xf32, #tpu.memory_space<vmem>>, vector<64x32xf32>
    %cst_134 = arith.constant dense<0.000000e+00> : vector<64x32xf32>
    %390 = tpu.matmul %388, %389, %cst_134 {dimension_numbers = #tpu.dot_dimension_numbers<[1], [0], [0], [1], [0, 0, 1, 1], [], []>} : vector<64x64xf32>, vector<64x32xf32>, vector<64x32xf32> -> vector<64x32xf32>
    %c0_135 = arith.constant 0 : index
    %c0_136 = arith.constant 0 : index
    %391 = vector.load %arg8[%c0_135, %c0_136] : memref<1x32xf32, #tpu.memory_space<vmem>>, vector<1x32xf32>
    %392 = vector.broadcast %391 : vector<1x32xf32> to vector<64x32xf32>
    %393 = arith.addf %390, %392 : vector<64x32xf32>
    %394 = vector.shape_cast %393 : vector<64x32xf32> to vector<8x8x32xf32>
    %c0_137 = arith.constant 0 : index
    %c0_138 = arith.constant 0 : index
    %c0_139 = arith.constant 0 : index
    %395 = vector.load %arg9[%c0_137, %c0_138, %c0_139] : memref<8x8x32xf32, #tpu.memory_space<vmem>>, vector<8x8x32xf32>
    tpu.vector_store %arg9[%c0_137, %c0_138, %c0_139], %394 {strides = array<i32>} : memref<8x8x32xf32, #tpu.memory_space<vmem>>, vector<8x8x32xf32>,
    return
  }
}

</mosaic_0001>

<llo_original>
// kernel: tpu_custom_call.1
$region0: #{tpu_custom_call.1}
  #allocation0 [shape = 'u32[]', space=smem, size = 0x4, offset = 0x4, fixed_abs, tag = 'smem constant byte address 0x4 - core index']
  #allocation1 [shape = 'u32[144,128]{1,0:T(1,128)}', space=vmem, size = 0x12000, scoped, tag = 'internal scratch']
  #allocation2 [shape = 'f32[8,8,192]{2,1,0:T(8,128)}', space=vmem, size = 0x10000, scoped, tag = 'scratch operand']
  #allocation3 [shape = 'f32[8,8,64]{2,1,0:T(8,128)}', space=vmem, size = 0x8000, scoped, tag = 'scratch operand']
  %s0 = inlined_call_operand.vmem [shape: f32[8,8,32], index: 0, kind: input, shape index: {}]
  %s1 = inlined_call_operand.hbm [shape: f32[32,192], index: 1, kind: input, shape index: {}]
  %s2 = inlined_call_operand.vmem [shape: f32[1,192], index: 2, kind: input, shape index: {}]
  %s3 = inlined_call_operand.hbm [shape: f32[64,192], index: 3, kind: input, shape index: {}]
  %s4 = inlined_call_operand.vmem [shape: f32[1,64], index: 4, kind: input, shape index: {}]
  %s5 = inlined_call_operand.vmem [shape: f32[1,64], index: 5, kind: input, shape index: {}]
  %s6 = inlined_call_operand.vmem [shape: f32[1,64], index: 6, kind: input, shape index: {}]
  %s7 = inlined_call_operand.vmem [shape: f32[64,32], index: 7, kind: input, shape index: {}]
  %s8 = inlined_call_operand.vmem [shape: f32[1,32], index: 8, kind: input, shape index: {}]
  %s9 = inlined_call_operand.hbm [shape: f32[8,8,32], index: 9, kind: output, shape index: {0}]
  %s10 = inlined_call_operand.hbm [shape: f32[2,8,32], index: 10, kind: output, shape index: {1}]
  %11 = xla_tuple %s9, %s10
  %s12 = sld [smem:[#allocation0]]
  $region62: #{tpu_custom_call.1} parent=0
    _
  %s14 = ssub.s32 1, %s12
  %s15 = scalar_select 0, %s14, %s12
  $region1: #{tpu_custom_call.1} parent=0
    #allocation4 [shape = 'u8[32768]{0}', space=vmem, size = 0x8000, scoped, tag = 'input window, operand 1, single buffered']
    #allocation5 [shape = 's32[1]{0}', space=sflag, size = 0x4, scoped, tag = 'scoped memory for tpu_custom_call.1']
    #allocation6 [shape = 's32[1]{0}', space=sflag, size = 0x4, scoped, tag = 'scoped memory for tpu_custom_call.1']
    #allocation7 [shape = 'u8[65536]{0}', space=vmem, size = 0x10000, scoped, tag = 'input window, operand 3, single buffered']
    #allocation8 [shape = 's32[1]{0}', space=sflag, size = 0x4, scoped, tag = 'scoped memory for tpu_custom_call.1']
    #allocation9 [shape = 'u8[32768]{0}', space=vmem, size = 0x8000, scoped, tag = 'output window, operand 0, single buffered']
    #allocation10 [shape = 'u8[8192]{0}', space=vmem, size = 0x2000, scoped, tag = 'output window, operand 1, single buffered']
    #allocation11 [shape = 's32[1]{0}', space=sflag, size = 0x4, scoped, tag = 'scoped memory for tpu_custom_call.1']
    %16 = vsyncpa [#allocation5], 0
    %17 = vsyncpa [#allocation8], 0
    %18 = vsyncpa [#allocation6], 0
    %19 = vsyncpa [#allocation11], 0
    // Predicated region
    $region2: #{tpu_custom_call.1} parent=1 // pred_check
      _
    $region3: #{tpu_custom_call.1} parent=1 // pred_check_branch
      %21 = sbr.rel (0) target = $region5
    $region4: #{tpu_custom_call.1} parent=1 // pred_region
      _
    $region5: #{tpu_custom_call.1} parent=1 // pred_fallthru
      _
    // Predicated region
    $region6: #{tpu_custom_call.1} parent=1 // pred_check
      _
    $region7: #{tpu_custom_call.1} parent=1 // pred_check_branch
      %23 = sbr.rel (0) target = $region9
    $region8: #{tpu_custom_call.1} parent=1 // pred_region
      %s25 = ssub.s32 1024, 1024
      %26 = vsyncadd [#allocation5], %s25
      %s27 = sshll.u32 [#allocation4], 4
      %s28 = int_to_ptr.vmem [resolvable:$true] %s27
      %33 = dma.hbm_to_vmem [thread:$0]  %s1, 1024, %s28, [#allocation5], 256, 256, 16
    $region9: #{tpu_custom_call.1} parent=1 // pred_fallthru
      _
    // Predicated region
    $region10: #{tpu_custom_call.1} parent=1 // pred_check
      _
    $region11: #{tpu_custom_call.1} parent=1 // pred_check_branch
      %35 = sbr.rel (0) target = $region13
    $region12: #{tpu_custom_call.1} parent=1 // pred_region
      _
    $region13: #{tpu_custom_call.1} parent=1 // pred_fallthru
      _
    // Predicated region
    $region14: #{tpu_custom_call.1} parent=1 // pred_check
      _
    $region15: #{tpu_custom_call.1} parent=1 // pred_check_branch
      %37 = sbr.rel (0) target = $region17
    $region16: #{tpu_custom_call.1} parent=1 // pred_region
      %s39 = ssub.s32 2048, 2048
      %40 = vsyncadd [#allocation8], %s39
      %s41 = sshll.u32 [#allocation7], 4
      %s42 = int_to_ptr.vmem [resolvable:$true] %s41
      %47 = dma.hbm_to_vmem [thread:$0]  %s3, 2048, %s42, [#allocation8], 256, 256, 16
    $region17: #{tpu_custom_call.1} parent=1 // pred_fallthru
      _
    // Predicated region
    $region18: #{tpu_custom_call.1} parent=1 // pred_check
      _
    $region19: #{tpu_custom_call.1} parent=1 // pred_check_branch
      %49 = sbr.rel (0) target = $region21
    $region20: #{tpu_custom_call.1} parent=1 // pred_region
      _
    $region21: #{tpu_custom_call.1} parent=1 // pred_fallthru
      _
    // Predicated region
    $region22: #{tpu_custom_call.1} parent=1 // pred_check
      _
    $region23: #{tpu_custom_call.1} parent=1 // pred_check_branch
      %51 = sbr.rel (0) target = $region25
    $region24: #{tpu_custom_call.1} parent=1 // pred_region
      _
    $region25: #{tpu_custom_call.1} parent=1 // pred_fallthru
      _
    // Predicated region
    $region26: #{tpu_custom_call.1} parent=1 // pred_check
      _
    $region27: #{tpu_custom_call.1} parent=1 // pred_check_branch
      %53 = sbr.rel (0) target = $region29
    $region28: #{tpu_custom_call.1} parent=1 // pred_region
      _
    $region29: #{tpu_custom_call.1} parent=1 // pred_fallthru
      _
    // Predicated region
    $region30: #{tpu_custom_call.1} parent=1 // pred_check
      _
    $region31: #{tpu_custom_call.1} parent=1 // pred_check_branch
      %55 = sbr.rel (0) target = $region33
    $region32: #{tpu_custom_call.1} parent=1 // pred_region
      _
    $region33: #{tpu_custom_call.1} parent=1 // pred_fallthru
      _
    // Predicated region
    $region34: #{tpu_custom_call.1} parent=1 // pred_check
      _
    $region35: #{tpu_custom_call.1} parent=1 // pred_check_branch
      %57 = sbr.rel (0) target = $region37
    $region36: #{tpu_custom_call.1} parent=1 // pred_region
      _
    $region37: #{tpu_custom_call.1} parent=1 // pred_fallthru
      _
    // Predicated region
    $region38: #{tpu_custom_call.1} parent=1 // pred_check
      _
    $region39: #{tpu_custom_call.1} parent=1 // pred_check_branch
      %59 = sbr.rel (0) target = $region41
    $region40: #{tpu_custom_call.1} parent=1 // pred_region
      %60 = dma.done [#allocation5], 1024
    $region41: #{tpu_custom_call.1} parent=1 // pred_fallthru
      _
    // Predicated region
    $region42: #{tpu_custom_call.1} parent=1 // pred_check
      _
    $region43: #{tpu_custom_call.1} parent=1 // pred_check_branch
      %62 = sbr.rel (0) target = $region45
    $region44: #{tpu_custom_call.1} parent=1 // pred_region
      %63 = dma.done [#allocation8], 2048
    $region45: #{tpu_custom_call.1} parent=1 // pred_fallthru
      _
    %v64 = vld [vmem:[%s0] sm:$0xff]
    %v65 = vld [vmem:[%s0 + $0x8] sm:$0xff]
    %v66 = vld [vmem:[%s0 + $0x10] sm:$0xff]
    %v67 = vld [vmem:[%s0 + $0x18] sm:$0xff]
    %v68 = vld [vmem:[%s0 + $0x20] sm:$0xff]
    %v69 = vld [vmem:[%s0 + $0x28] sm:$0xff]
    %v70 = vld [vmem:[%s0 + $0x30] sm:$0xff]
    %v71 = vld [vmem:[%s0 + $0x38] sm:$0xff]
    %v72 = vld [vmem:[#allocation4] sm:$0xff]
    %v73 = vld [vmem:[#allocation4 + $0x8] sm:$0xff]
    %v74 = vld [vmem:[#allocation4 + $0x10] sm:$0xff]
    %v75 = vld [vmem:[#allocation4 + $0x18] sm:$0xff]
    %v76 = vld [vmem:[#allocation4 + $0x20] sm:$0xff]
    %v77 = vld [vmem:[#allocation4 + $0x28] sm:$0xff]
    %v78 = vld [vmem:[#allocation4 + $0x30] sm:$0xff]
    %v79 = vld [vmem:[#allocation4 + $0x38] sm:$0xff]
    %v80 = vld [vmem:[%s2] sm:$0x3]
    %v82 = vlaneseq
    %v83 = vshrl.u32 %v82, 7
    %v84 = vsub.s32 0, %v83
    %v85 = vrot.slane %v80, %v84
    %v86 = vlaneseq
    %v87 = vshrl.u32 %v86, 7
    %v88 = vsub.s32 1, %v87
    %v89 = vrot.slane %v80, %v88
    %vm92 = vcmask 261120
    %v94 = vsel %vm92, %v64, 0
    %v97 = vsel %vm92, %v65, 0
    %v100 = vsel %vm92, %v66, 0
    %v103 = vsel %vm92, %v67, 0
    %v106 = vsel %vm92, %v68, 0
    %v109 = vsel %vm92, %v69, 0
    %v112 = vsel %vm92, %v70, 0
    %v115 = vsel %vm92, %v71, 0
    %117 = vmatprep.subr.mxu0 %v73
    %118 = vmatpush1.msra.mxu0 %v72
    %119 = vmatprep.subr.mxu0 %v75
    %120 = vmatpush1.msra.mxu0 %v74
    %121 = vmatprep.subr.mxu0 %v77
    %122 = vmatpush1.msra.mxu0 %v76
    %123 = vmatprep.subr.mxu0 %v79
    %124 = vmatpush1.msra.mxu0 %v78
    %125 = vmatprep.subr.mxu0 0.0
    %126 = vmatpush1.msra.mxu0 0.0
    %127 = vmatprep.subr.mxu0 0.0
    %128 = vmatpush1.msra.mxu0 0.0
    %129 = vmatprep.subr.mxu0 0.0
    %130 = vmatpush1.msra.mxu0 0.0
    %131 = vmatprep.subr.mxu0 0.0
    %132 = vmatpush1.msra.mxu0 0.0
    %133 = vmatprep.subr.mxu0 0.0
    %134 = vmatpush1.msra.mxu0 0.0
    %135 = vmatprep.subr.mxu0 0.0
    %136 = vmatpush1.msra.mxu0 0.0
    %137 = vmatprep.subr.mxu0 0.0
    %138 = vmatpush1.msra.mxu0 0.0
    %139 = vmatprep.subr.mxu0 0.0
    %140 = vmatpush1.msra.mxu0 0.0
    %141 = vmatprep.subr.mxu0 0.0
    %142 = vmatpush1.msra.mxu0 0.0
    %143 = vmatprep.subr.mxu0 0.0
    %144 = vmatpush1.msra.mxu0 0.0
    %145 = vmatprep.subr.mxu0 0.0
    %146 = vmatpush1.msra.mxu0 0.0
    %147 = vmatprep.subr.mxu0 0.0
    %148 = vmatpush1.msra.mxu0 0.0
    %149 = vmatprep.subr.mxu0 0.0
    %150 = vmatpush1.msra.mxu0 0.0
    %151 = vmatprep.subr.mxu0 0.0
    %152 = vmatpush1.msra.mxu0 0.0
    %153 = vmatprep.subr.mxu0 0.0
    %154 = vmatpush1.msra.mxu0 0.0
    %155 = vmatprep.subr.mxu0 0.0
    %156 = vmatpush1.msra.mxu0 0.0
    %157 = vmatprep.subr.mxu0 0.0
    %158 = vmatpush1.msra.mxu0 0.0
    %159 = vmatprep.subr.mxu0 0.0
    %160 = vmatpush1.msra.mxu0 0.0
    %161 = vmatprep.subr.mxu0 0.0
    %162 = vmatpush1.msra.mxu0 0.0
    %163 = vmatprep.subr.mxu0 0.0
    %164 = vmatpush1.msra.mxu0 0.0
    %165 = vmatprep.subr.mxu0 0.0
    %166 = vmatpush1.msra.mxu0 0.0
    %167 = vmatprep.subr.mxu0 0.0
    %168 = vmatpush1.msra.mxu0 0.0
    %169 = vmatprep.subr.mxu0 0.0
    %170 = vmatpush1.msra.mxu0 0.0
    %171 = vmatprep.subr.mxu0 0.0
    %172 = vmatpush1.msra.mxu0 0.0
    %173 = vmatprep.subr.mxu0 0.0
    %174 = vmatpush1.msra.mxu0 0.0
    %175 = vmatprep.subr.mxu0 0.0
    %176 = vmatpush1.msra.mxu0 0.0
    %177 = vmatprep.subr.mxu0 0.0
    %178 = vmatpush1.msra.mxu0 0.0
    %179 = vmatprep.subr.mxu0 0.0
    %180 = vmatpush1.msra.mxu0 0.0
    %181 = vmatprep.mubr.f32.mxu0 0.0
    %182 = vmatmul.mubr.f32.gmra.mrb[0].mxu0 %v94
    %v183 = vpop.f32.mrb[0].mxu0
    %v184 = vadd.f32 %v85, %v183
    %v185 = vpop.f32.mrb[0].mxu0
    %v186 = vadd.f32 %v89, %v185
    %187 = vmatprep.mubr.f32.mxu0 0.0
    %188 = vmatmul.mubr.f32.gmra.mrb[0].mxu0 %v97
    %v189 = vpop.f32.mrb[0].mxu0
    %v190 = vadd.f32 %v85, %v189
    %v191 = vpop.f32.mrb[0].mxu0
    %v192 = vadd.f32 %v89, %v191
    %193 = vmatprep.mubr.f32.mxu0 0.0
    %194 = vmatmul.mubr.f32.gmra.mrb[0].mxu0 %v100
    %v195 = vpop.f32.mrb[0].mxu0
    %v196 = vadd.f32 %v85, %v195
    %v197 = vpop.f32.mrb[0].mxu0
    %v198 = vadd.f32 %v89, %v197
    %199 = vmatprep.mubr.f32.mxu0 0.0
    %200 = vmatmul.mubr.f32.gmra.mrb[0].mxu0 %v103
    %v201 = vpop.f32.mrb[0].mxu0
    %v202 = vadd.f32 %v85, %v201
    %v203 = vpop.f32.mrb[0].mxu0
    %v204 = vadd.f32 %v89, %v203
    %205 = vmatprep.mubr.f32.mxu0 0.0
    %206 = vmatmul.mubr.f32.gmra.mrb[0].mxu0 %v106
    %v207 = vpop.f32.mrb[0].mxu0
    %v208 = vadd.f32 %v85, %v207
    %v209 = vpop.f32.mrb[0].mxu0
    %v210 = vadd.f32 %v89, %v209
    %211 = vmatprep.mubr.f32.mxu0 0.0
    %212 = vmatmul.mubr.f32.gmra.mrb[0].mxu0 %v109
    %v213 = vpop.f32.mrb[0].mxu0
    %v214 = vadd.f32 %v85, %v213
    %v215 = vpop.f32.mrb[0].mxu0
    %v216 = vadd.f32 %v89, %v215
    %217 = vmatprep.mubr.f32.mxu0 0.0
    %218 = vmatmul.mubr.f32.gmra.mrb[0].mxu0 %v112
    %v219 = vpop.f32.mrb[0].mxu0
    %v220 = vadd.f32 %v85, %v219
    %v221 = vpop.f32.mrb[0].mxu0
    %v222 = vadd.f32 %v89, %v221
    %223 = vmatprep.mubr.f32.mxu0 0.0
    %224 = vmatmul.mubr.f32.gmra.mrb[0].mxu0 %v115
    %v225 = vpop.f32.mrb[0].mxu0
    %v226 = vadd.f32 %v85, %v225
    %v227 = vpop.f32.mrb[0].mxu0
    %v228 = vadd.f32 %v89, %v227
    %229 = vdwg.mxu0
    %230 = vst [vmem:[#allocation2] sm:$0xff] %v184
    %vm231 = vcmask 523264
    %232 = vst.msk [vmem:[#allocation2 + $0x8] sm:$0xff] %vm231, %v186
    %233 = vst [vmem:[#allocation2 + $0x10] sm:$0xff] %v190
    %234 = vst.msk [vmem:[#allocation2 + $0x18] sm:$0xff] %vm231, %v192
    %235 = vst [vmem:[#allocation2 + $0x20] sm:$0xff] %v196
    %236 = vst.msk [vmem:[#allocation2 + $0x28] sm:$0xff] %vm231, %v198
    %237 = vst [vmem:[#allocation2 + $0x30] sm:$0xff] %v202
    %238 = vst.msk [vmem:[#allocation2 + $0x38] sm:$0xff] %vm231, %v204
    %239 = vst [vmem:[#allocation2 + $0x40] sm:$0xff] %v208
    %240 = vst.msk [vmem:[#allocation2 + $0x48] sm:$0xff] %vm231, %v210
    %241 = vst [vmem:[#allocation2 + $0x50] sm:$0xff] %v214
    %242 = vst.msk [vmem:[#allocation2 + $0x58] sm:$0xff] %vm231, %v216
    %243 = vst [vmem:[#allocation2 + $0x60] sm:$0xff] %v220
    %244 = vst.msk [vmem:[#allocation2 + $0x68] sm:$0xff] %vm231, %v222
    %245 = vst [vmem:[#allocation2 + $0x70] sm:$0xff] %v226
    %246 = vst.msk [vmem:[#allocation2 + $0x78] sm:$0xff] %vm231, %v228
    %v247 = vld [vmem:[%s4] sm:$0x1]
    %v249 = vlaneseq
    %v250 = vshrl.u32 %v249, 7
    %v251 = vsub.s32 0, %v250
    %v252 = vrot.slane %v247, %v251
    %v254 = vld [vmem:[#allocation2] sm:$0xff]
    %v255 = vld [vmem:[#allocation2 + $0x8] sm:$0xff]
    %v256 = vld [vmem:[#allocation7] sm:$0xff]
    %v257 = vld [vmem:[#allocation7 + $0x8] sm:$0xff]
    %v258 = vld [vmem:[#allocation7 + $0x10] sm:$0xff]
    %v259 = vld [vmem:[#allocation7 + $0x18] sm:$0xff]
    %v260 = vld [vmem:[#allocation7 + $0x20] sm:$0xff]
    %v261 = vld [vmem:[#allocation7 + $0x28] sm:$0xff]
    %v262 = vld [vmem:[#allocation7 + $0x30] sm:$0xff]
    %v263 = vld [vmem:[#allocation7 + $0x38] sm:$0xff]
    %v264 = vld [vmem:[#allocation7 + $0x40] sm:$0xff]
    %v265 = vld [vmem:[#allocation7 + $0x48] sm:$0xff]
    %v266 = vld [vmem:[#allocation7 + $0x50] sm:$0xff]
    %v267 = vld [vmem:[#allocation7 + $0x58] sm:$0xff]
    %v268 = vld [vmem:[#allocation7 + $0x60] sm:$0xff]
    %v269 = vld [vmem:[#allocation7 + $0x68] sm:$0xff]
    %v270 = vld [vmem:[#allocation7 + $0x70] sm:$0xff]
    %v271 = vld [vmem:[#allocation7 + $0x78] sm:$0xff]
    %v273 = vsel %vm231, 0.0, 0
    %275 = vmatprep.subr.mxu0 %v257
    %276 = vmatpush1.msra.mxu0 %v256
    %277 = vmatprep.subr.mxu0 %v259
    %278 = vmatpush1.msra.mxu0 %v258
    %279 = vmatprep.subr.mxu0 %v261
    %280 = vmatpush1.msra.mxu0 %v260
    %281 = vmatprep.subr.mxu0 %v263
    %282 = vmatpush1.msra.mxu0 %v262
    %283 = vmatprep.subr.mxu0 %v265
    %284 = vmatpush1.msra.mxu0 %v264
    %285 = vmatprep.subr.mxu0 %v267
    %286 = vmatpush1.msra.mxu0 %v266
    %287 = vmatprep.subr.mxu0 %v269
    %288 = vmatpush1.msra.mxu0 %v268
    %289 = vmatprep.subr.mxu0 %v271
    %290 = vmatpush1.msra.mxu0 %v270
    %291 = vmatprep.subr.mxu0 0.0
    %292 = vmatpush1.msra.mxu0 0.0
    %293 = vmatprep.subr.mxu0 0.0
    %294 = vmatpush1.msra.mxu0 0.0
    %295 = vmatprep.subr.mxu0 0.0
    %296 = vmatpush1.msra.mxu0 0.0
    %297 = vmatprep.subr.mxu0 0.0
    %298 = vmatpush1.msra.mxu0 0.0
    %299 = vmatprep.subr.mxu0 0.0
    %300 = vmatpush1.msra.mxu0 0.0
    %301 = vmatprep.subr.mxu0 0.0
    %302 = vmatpush1.msra.mxu0 0.0
    %303 = vmatprep.subr.mxu0 0.0
    %304 = vmatpush1.msra.mxu0 0.0
    %305 = vmatprep.subr.mxu0 0.0
    %306 = vmatpush1.msra.mxu0 0.0
    %307 = vmatprep.subr.mxu0 0.0
    %308 = vmatpush1.msra.mxu0 0.0
    %309 = vmatprep.subr.mxu0 0.0
    %310 = vmatpush1.msra.mxu0 0.0
    %311 = vmatprep.subr.mxu0 0.0
    %312 = vmatpush1.msra.mxu0 0.0
    %313 = vmatprep.subr.mxu0 0.0
    %314 = vmatpush1.msra.mxu0 0.0
    %315 = vmatprep.subr.mxu0 0.0
    %316 = vmatpush1.msra.mxu0 0.0
    %317 = vmatprep.subr.mxu0 0.0
    %318 = vmatpush1.msra.mxu0 0.0
    %319 = vmatprep.subr.mxu0 0.0
    %320 = vmatpush1.msra.mxu0 0.0
    %321 = vmatprep.subr.mxu0 0.0
    %322 = vmatpush1.msra.mxu0 0.0
    %323 = vmatprep.subr.mxu0 0.0
    %324 = vmatpush1.msra.mxu0 0.0
    %325 = vmatprep.subr.mxu0 0.0
    %326 = vmatpush1.msra.mxu0 0.0
    %327 = vmatprep.subr.mxu0 0.0
    %328 = vmatpush1.msra.mxu0 0.0
    %329 = vmatprep.subr.mxu0 0.0
    %330 = vmatpush1.msra.mxu0 0.0
    %331 = vmatprep.subr.mxu0 0.0
    %332 = vmatpush1.msra.mxu0 0.0
    %333 = vmatprep.subr.mxu0 0.0
    %334 = vmatpush1.msra.mxu0 0.0
    %335 = vmatprep.subr.mxu0 0.0
    %336 = vmatpush1.msra.mxu0 0.0
    %337 = vmatprep.subr.mxu0 0.0
    %338 = vmatpush1.msra.mxu0 0.0
    %339 = vmatprep.mubr.f32.mxu0 0.0
    %340 = vmatmul.mubr.f32.gmra.mrb[0].mxu0 %v273
    %v341 = vpop.f32.mrb[0].mxu0
    %v342 = vadd.f32 0.0, %v341
    %v343 = vpop.f32.mrb[0].mxu0
    %v344 = vadd.f32 0.0, %v343
    %345 = vdwg.mxu0
    %v346 = vadd.f32 %v254, %v342
    %v347 = vxor.u32 %v346, 2147483648
    %v348 = vmul.f32 %v347, 1.442695
    %v349 = vpow.pop %v348
    %v350 = vadd.f32 %v349, 1.0
    %v351 = vrcp.pop %v350
    %v352 = vmul.f32 1.0, %v351
    %v353 = vadd.f32 %v344, %v252
    %v354 = vmul.f32 %v352, %v353
    %v355 = vadd.f32 %v255, %v354
    %v356 = vtanh.pop %v355
    %v357 = vsub.f32 1.0, %v352
    %359 = vrot.lane.b32.xlu0 %v356, 64
    %v360 = vpop.permute.xlu0 %359
    %v362 = vmul.f32 %v357, %v360
    %v363 = vmul.f32 %v352, 0.0
    %v364 = vadd.f32 %v362, %v363
    %366 = vrot.lane.b32.xlu0 %v364, 64
    %v367 = vpop.permute.xlu0 %366
    %369 = vst.msk [vmem:[#allocation3] sm:$0xff] %vm92, %v367
    %s370 = scalar_lea.vmem [#allocation3], 56
    %vm371 = vcmask 523520
    %372 = vst.msk [vmem:[%s370] sm:$0xff] %vm371, %v367
    %s373 = scalar_lea.vmem [#allocation2], 16
    %v374 = vld [vmem:[%s373] sm:$0xff]
    %v375 = vld [vmem:[%s373 + $0x8] sm:$0xff]
    %v376 = vld [vmem:[#allocation7] sm:$0xff]
    %v377 = vld [vmem:[#allocation7 + $0x8] sm:$0xff]
    %v378 = vld [vmem:[#allocation7 + $0x10] sm:$0xff]
    %v379 = vld [vmem:[#allocation7 + $0x18] sm:$0xff]
    %v380 = vld [vmem:[#allocation7 + $0x20] sm:$0xff]
    %v381 = vld [vmem:[#allocation7 + $0x28] sm:$0xff]
    %v382 = vld [vmem:[#allocation7 + $0x30] sm:$0xff]
    %v383 = vld [vmem:[#allocation7 + $0x38] sm:$0xff]
    %v384 = vld [vmem:[#allocation7 + $0x40] sm:$0xff]
    %v385 = vld [vmem:[#allocation7 + $0x48] sm:$0xff]
    %v386 = vld [vmem:[#allocation7 + $0x50] sm:$0xff]
    %v387 = vld [vmem:[#allocation7 + $0x58] sm:$0xff]
    %v388 = vld [vmem:[#allocation7 + $0x60] sm:$0xff]
    %v389 = vld [vmem:[#allocation7 + $0x68] sm:$0xff]
    %v390 = vld [vmem:[#allocation7 + $0x70] sm:$0xff]
    %v391 = vld [vmem:[#allocation7 + $0x78] sm:$0xff]
    %v392 = vsel %vm231, %v367, 0
    %394 = vmatprep.subr.mxu0 %v377
    %395 = vmatpush1.msra.mxu0 %v376
    %396 = vmatprep.subr.mxu0 %v379
    %397 = vmatpush1.msra.mxu0 %v378
    %398 = vmatprep.subr.mxu0 %v381
    %399 = vmatpush1.msra.mxu0 %v380
    %400 = vmatprep.subr.mxu0 %v383
    %401 = vmatpush1.msra.mxu0 %v382
    %402 = vmatprep.subr.mxu0 %v385
    %403 = vmatpush1.msra.mxu0 %v384
    %404 = vmatprep.subr.mxu0 %v387
    %405 = vmatpush1.msra.mxu0 %v386
    %406 = vmatprep.subr.mxu0 %v389
    %407 = vmatpush1.msra.mxu0 %v388
    %408 = vmatprep.subr.mxu0 %v391
    %409 = vmatpush1.msra.mxu0 %v390
    %410 = vmatprep.subr.mxu0 0.0
    %411 = vmatpush1.msra.mxu0 0.0
    %412 = vmatprep.subr.mxu0 0.0
    %413 = vmatpush1.msra.mxu0 0.0
    %414 = vmatprep.subr.mxu0 0.0
    %415 = vmatpush1.msra.mxu0 0.0
    %416 = vmatprep.subr.mxu0 0.0
    %417 = vmatpush1.msra.mxu0 0.0
    %418 = vmatprep.subr.mxu0 0.0
    %419 = vmatpush1.msra.mxu0 0.0
    %420 = vmatprep.subr.mxu0 0.0
    %421 = vmatpush1.msra.mxu0 0.0
    %422 = vmatprep.subr.mxu0 0.0
    %423 = vmatpush1.msra.mxu0 0.0
    %424 = vmatprep.subr.mxu0 0.0
    %425 = vmatpush1.msra.mxu0 0.0
    %426 = vmatprep.subr.mxu0 0.0
    %427 = vmatpush1.msra.mxu0 0.0
    %428 = vmatprep.subr.mxu0 0.0
    %429 = vmatpush1.msra.mxu0 0.0
    %430 = vmatprep.subr.mxu0 0.0
    %431 = vmatpush1.msra.mxu0 0.0
    %432 = vmatprep.subr.mxu0 0.0
    %433 = vmatpush1.msra.mxu0 0.0
    %434 = vmatprep.subr.mxu0 0.0
    %435 = vmatpush1.msra.mxu0 0.0
    %436 = vmatprep.subr.mxu0 0.0
    %437 = vmatpush1.msra.mxu0 0.0
    %438 = vmatprep.subr.mxu0 0.0
    %439 = vmatpush1.msra.mxu0 0.0
    %440 = vmatprep.subr.mxu0 0.0
    %441 = vmatpush1.msra.mxu0 0.0
    %442 = vmatprep.subr.mxu0 0.0
    %443 = vmatpush1.msra.mxu0 0.0
    %444 = vmatprep.subr.mxu0 0.0
    %445 = vmatpush1.msra.mxu0 0.0
    %446 = vmatprep.subr.mxu0 0.0
    %447 = vmatpush1.msra.mxu0 0.0
    %448 = vmatprep.subr.mxu0 0.0
    %449 = vmatpush1.msra.mxu0 0.0
    %450 = vmatprep.subr.mxu0 0.0
    %451 = vmatpush1.msra.mxu0 0.0
    %452 = vmatprep.subr.mxu0 0.0
    %453 = vmatpush1.msra.mxu0 0.0
    %454 = vmatprep.subr.mxu0 0.0
    %455 = vmatpush1.msra.mxu0 0.0
    %456 = vmatprep.subr.mxu0 0.0
    %457 = vmatpush1.msra.mxu0 0.0
    %458 = vmatprep.mubr.f32.mxu0 0.0
    %459 = vmatmul.mubr.f32.gmra.mrb[0].mxu0 %v392
    %v460 = vpop.f32.mrb[0].mxu0
    %v461 = vadd.f32 0.0, %v460
    %v462 = vpop.f32.mrb[0].mxu0
    %v463 = vadd.f32 0.0, %v462
    %464 = vdwg.mxu0
    %v465 = vadd.f32 %v374, %v461
    %v466 = vxor.u32 %v465, 2147483648
    %v467 = vmul.f32 %v466, 1.442695
    %v468 = vpow.pop %v467
    %v469 = vadd.f32 %v468, 1.0
    %v470 = vrcp.pop %v469
    %v471 = vmul.f32 1.0, %v470
    %v472 = vadd.f32 %v463, %v252
    %v473 = vmul.f32 %v471, %v472
    %v474 = vadd.f32 %v375, %v473
    %v475 = vtanh.pop %v474
    %v476 = vsub.f32 1.0, %v471
    %478 = vrot.lane.b32.xlu0 %v475, 64
    %v479 = vpop.permute.xlu0 %478
    %v481 = vmul.f32 %v476, %v479
    %v482 = vmul.f32 %v471, %v364
    %v483 = vadd.f32 %v481, %v482
    %485 = vrot.lane.b32.xlu0 %v483, 64
    %v486 = vpop.permute.xlu0 %485
    %s488 = scalar_lea.vmem [#allocation3], 8
    %489 = vst.msk [vmem:[%s488] sm:$0xff] %vm92, %v486
    %s490 = scalar_lea.vmem [#allocation3], 48
    %491 = vst.msk [vmem:[%s490] sm:$0xff] %vm371, %v486
    %s492 = scalar_lea.vmem [#allocation2], 32
    %v493 = vld [vmem:[%s492] sm:$0xff]
    %v494 = vld [vmem:[%s492 + $0x8] sm:$0xff]
    %v495 = vld [vmem:[#allocation7] sm:$0xff]
    %v496 = vld [vmem:[#allocation7 + $0x8] sm:$0xff]
    %v497 = vld [vmem:[#allocation7 + $0x10] sm:$0xff]
    %v498 = vld [vmem:[#allocation7 + $0x18] sm:$0xff]
    %v499 = vld [vmem:[#allocation7 + $0x20] sm:$0xff]
    %v500 = vld [vmem:[#allocation7 + $0x28] sm:$0xff]
    %v501 = vld [vmem:[#allocation7 + $0x30] sm:$0xff]
    %v502 = vld [vmem:[#allocation7 + $0x38] sm:$0xff]
    %v503 = vld [vmem:[#allocation7 + $0x40] sm:$0xff]
    %v504 = vld [vmem:[#allocation7 + $0x48] sm:$0xff]
    %v505 = vld [vmem:[#allocation7 + $0x50] sm:$0xff]
    %v506 = vld [vmem:[#allocation7 + $0x58] sm:$0xff]
    %v507 = vld [vmem:[#allocation7 + $0x60] sm:$0xff]
    %v508 = vld [vmem:[#allocation7 + $0x68] sm:$0xff]
    %v509 = vld [vmem:[#allocation7 + $0x70] sm:$0xff]
    %v510 = vld [vmem:[#allocation7 + $0x78] sm:$0xff]
    %v511 = vsel %vm231, %v486, 0
    %513 = vmatprep.subr.mxu0 %v496
    %514 = vmatpush1.msra.mxu0 %v495
    %515 = vmatprep.subr.mxu0 %v498
    %516 = vmatpush1.msra.mxu0 %v497
    %517 = vmatprep.subr.mxu0 %v500
    %518 = vmatpush1.msra.mxu0 %v499
    %519 = vmatprep.subr.mxu0 %v502
    %520 = vmatpush1.msra.mxu0 %v501
    %521 = vmatprep.subr.mxu0 %v504
    %522 = vmatpush1.msra.mxu0 %v503
    %523 = vmatprep.subr.mxu0 %v506
    %524 = vmatpush1.msra.mxu0 %v505
    %525 = vmatprep.subr.mxu0 %v508
    %526 = vmatpush1.msra.mxu0 %v507
    %527 = vmatprep.subr.mxu0 %v510
    %528 = vmatpush1.msra.mxu0 %v509
    %529 = vmatprep.subr.mxu0 0.0
    %530 = vmatpush1.msra.mxu0 0.0
    %531 = vmatprep.subr.mxu0 0.0
    %532 = vmatpush1.msra.mxu0 0.0
    %533 = vmatprep.subr.mxu0 0.0
    %534 = vmatpush1.msra.mxu0 0.0
    %535 = vmatprep.subr.mxu0 0.0
    %536 = vmatpush1.msra.mxu0 0.0
    %537 = vmatprep.subr.mxu0 0.0
    %538 = vmatpush1.msra.mxu0 0.0
    %539 = vmatprep.subr.mxu0 0.0
    %540 = vmatpush1.msra.mxu0 0.0
    %541 = vmatprep.subr.mxu0 0.0
    %542 = vmatpush1.msra.mxu0 0.0
    %543 = vmatprep.subr.mxu0 0.0
    %544 = vmatpush1.msra.mxu0 0.0
    %545 = vmatprep.subr.mxu0 0.0
    %546 = vmatpush1.msra.mxu0 0.0
    %547 = vmatprep.subr.mxu0 0.0
    %548 = vmatpush1.msra.mxu0 0.0
    %549 = vmatprep.subr.mxu0 0.0
    %550 = vmatpush1.msra.mxu0 0.0
    %551 = vmatprep.subr.mxu0 0.0
    %552 = vmatpush1.msra.mxu0 0.0
    %553 = vmatprep.subr.mxu0 0.0
    %554 = vmatpush1.msra.mxu0 0.0
    %555 = vmatprep.subr.mxu0 0.0
    %556 = vmatpush1.msra.mxu0 0.0
    %557 = vmatprep.subr.mxu0 0.0
    %558 = vmatpush1.msra.mxu0 0.0
    %559 = vmatprep.subr.mxu0 0.0
    %560 = vmatpush1.msra.mxu0 0.0
    %561 = vmatprep.subr.mxu0 0.0
    %562 = vmatpush1.msra.mxu0 0.0
    %563 = vmatprep.subr.mxu0 0.0
    %564 = vmatpush1.msra.mxu0 0.0
    %565 = vmatprep.subr.mxu0 0.0
    %566 = vmatpush1.msra.mxu0 0.0
    %567 = vmatprep.subr.mxu0 0.0
    %568 = vmatpush1.msra.mxu0 0.0
    %569 = vmatprep.subr.mxu0 0.0
    %570 = vmatpush1.msra.mxu0 0.0
    %571 = vmatprep.subr.mxu0 0.0
    %572 = vmatpush1.msra.mxu0 0.0
    %573 = vmatprep.subr.mxu0 0.0
    %574 = vmatpush1.msra.mxu0 0.0
    %575 = vmatprep.subr.mxu0 0.0
    %576 = vmatpush1.msra.mxu0 0.0
    %577 = vmatprep.mubr.f32.mxu0 0.0
    %578 = vmatmul.mubr.f32.gmra.mrb[0].mxu0 %v511
    %v579 = vpop.f32.mrb[0].mxu0
    %v580 = vadd.f32 0.0, %v579
    %v581 = vpop.f32.mrb[0].mxu0
    %v582 = vadd.f32 0.0, %v581
    %583 = vdwg.mxu0
    %v584 = vadd.f32 %v493, %v580
    %v585 = vxor.u32 %v584, 2147483648
    %v586 = vmul.f32 %v585, 1.442695
    %v587 = vpow.pop %v586
    %v588 = vadd.f32 %v587, 1.0
    %v589 = vrcp.pop %v588
    %v590 = vmul.f32 1.0, %v589
    %v591 = vadd.f32 %v582, %v252
    %v592 = vmul.f32 %v590, %v591
    %v593 = vadd.f32 %v494, %v592
    %v594 = vtanh.pop %v593
    %v595 = vsub.f32 1.0, %v590
    %597 = vrot.lane.b32.xlu0 %v594, 64
    %v598 = vpop.permute.xlu0 %597
    %v600 = vmul.f32 %v595, %v598
    %v601 = vmul.f32 %v590, %v483
    %v602 = vadd.f32 %v600, %v601
    %604 = vrot.lane.b32.xlu0 %v602, 64
    %v605 = vpop.permute.xlu0 %604
    %s607 = scalar_lea.vmem [#allocation3], 16
    %608 = vst.msk [vmem:[%s607] sm:$0xff] %vm92, %v605
    %s609 = scalar_lea.vmem [#allocation3], 40
    %610 = vst.msk [vmem:[%s609] sm:$0xff] %vm371, %v605
    %s611 = scalar_lea.vmem [#allocation2], 48
    %v612 = vld [vmem:[%s611] sm:$0xff]
    %v613 = vld [vmem:[%s611 + $0x8] sm:$0xff]
    %v614 = vld [vmem:[#allocation7] sm:$0xff]
    %v615 = vld [vmem:[#allocation7 + $0x8] sm:$0xff]
    %v616 = vld [vmem:[#allocation7 + $0x10] sm:$0xff]
    %v617 = vld [vmem:[#allocation7 + $0x18] sm:$0xff]
    %v618 = vld [vmem:[#allocation7 + $0x20] sm:$0xff]
    %v619 = vld [vmem:[#allocation7 + $0x28] sm:$0xff]
    %v620 = vld [vmem:[#allocation7 + $0x30] sm:$0xff]
    %v621 = vld [vmem:[#allocation7 + $0x38] sm:$0xff]
    %v622 = vld [vmem:[#allocation7 + $0x40] sm:$0xff]
    %v623 = vld [vmem:[#allocation7 + $0x48] sm:$0xff]
    %v624 = vld [vmem:[#allocation7 + $0x50] sm:$0xff]
    %v625 = vld [vmem:[#allocation7 + $0x58] sm:$0xff]
    %v626 = vld [vmem:[#allocation7 + $0x60] sm:$0xff]
    %v627 = vld [vmem:[#allocation7 + $0x68] sm:$0xff]
    %v628 = vld [vmem:[#allocation7 + $0x70] sm:$0xff]
    %v629 = vld [vmem:[#allocation7 + $0x78] sm:$0xff]
    %v630 = vsel %vm231, %v605, 0
    %632 = vmatprep.subr.mxu0 %v615
    %633 = vmatpush1.msra.mxu0 %v614
    %634 = vmatprep.subr.mxu0 %v617
    %635 = vmatpush1.msra.mxu0 %v616
    %636 = vmatprep.subr.mxu0 %v619
    %637 = vmatpush1.msra.mxu0 %v618
    %638 = vmatprep.subr.mxu0 %v621
    %639 = vmatpush1.msra.mxu0 %v620
    %640 = vmatprep.subr.mxu0 %v623
    %641 = vmatpush1.msra.mxu0 %v622
    %642 = vmatprep.subr.mxu0 %v625
    %643 = vmatpush1.msra.mxu0 %v624
    %644 = vmatprep.subr.mxu0 %v627
    %645 = vmatpush1.msra.mxu0 %v626
    %646 = vmatprep.subr.mxu0 %v629
    %647 = vmatpush1.msra.mxu0 %v628
    %648 = vmatprep.subr.mxu0 0.0
    %649 = vmatpush1.msra.mxu0 0.0
    %650 = vmatprep.subr.mxu0 0.0
    %651 = vmatpush1.msra.mxu0 0.0
    %652 = vmatprep.subr.mxu0 0.0
    %653 = vmatpush1.msra.mxu0 0.0
    %654 = vmatprep.subr.mxu0 0.0
    %655 = vmatpush1.msra.mxu0 0.0
    %656 = vmatprep.subr.mxu0 0.0
    %657 = vmatpush1.msra.mxu0 0.0
    %658 = vmatprep.subr.mxu0 0.0
    %659 = vmatpush1.msra.mxu0 0.0
    %660 = vmatprep.subr.mxu0 0.0
    %661 = vmatpush1.msra.mxu0 0.0
    %662 = vmatprep.subr.mxu0 0.0
    %663 = vmatpush1.msra.mxu0 0.0
    %664 = vmatprep.subr.mxu0 0.0
    %665 = vmatpush1.msra.mxu0 0.0
    %666 = vmatprep.subr.mxu0 0.0
    %667 = vmatpush1.msra.mxu0 0.0
    %668 = vmatprep.subr.mxu0 0.0
    %669 = vmatpush1.msra.mxu0 0.0
    %670 = vmatprep.subr.mxu0 0.0
    %671 = vmatpush1.msra.mxu0 0.0
    %672 = vmatprep.subr.mxu0 0.0
    %673 = vmatpush1.msra.mxu0 0.0
    %674 = vmatprep.subr.mxu0 0.0
    %675 = vmatpush1.msra.mxu0 0.0
    %676 = vmatprep.subr.mxu0 0.0
    %677 = vmatpush1.msra.mxu0 0.0
    %678 = vmatprep.subr.mxu0 0.0
    %679 = vmatpush1.msra.mxu0 0.0
    %680 = vmatprep.subr.mxu0 0.0
    %681 = vmatpush1.msra.mxu0 0.0
    %682 = vmatprep.subr.mxu0 0.0
    %683 = vmatpush1.msra.mxu0 0.0
    %684 = vmatprep.subr.mxu0 0.0
    %685 = vmatpush1.msra.mxu0 0.0
    %686 = vmatprep.subr.mxu0 0.0
    %687 = vmatpush1.msra.mxu0 0.0
    %688 = vmatprep.subr.mxu0 0.0
    %689 = vmatpush1.msra.mxu0 0.0
    %690 = vmatprep.subr.mxu0 0.0
    %691 = vmatpush1.msra.mxu0 0.0
    %692 = vmatprep.subr.mxu0 0.0
    %693 = vmatpush1.msra.mxu0 0.0
    %694 = vmatprep.subr.mxu0 0.0
    %695 = vmatpush1.msra.mxu0 0.0
    %696 = vmatprep.mubr.f32.mxu0 0.0
    %697 = vmatmul.mubr.f32.gmra.mrb[0].mxu0 %v630
    %v698 = vpop.f32.mrb[0].mxu0
    %v699 = vadd.f32 0.0, %v698
    %v700 = vpop.f32.mrb[0].mxu0
    %v701 = vadd.f32 0.0, %v700
    %702 = vdwg.mxu0
    %v703 = vadd.f32 %v612, %v699
    %v704 = vxor.u32 %v703, 2147483648
    %v705 = vmul.f32 %v704, 1.442695
    %v706 = vpow.pop %v705
    %v707 = vadd.f32 %v706, 1.0
    %v708 = vrcp.pop %v707
    %v709 = vmul.f32 1.0, %v708
    %v710 = vadd.f32 %v701, %v252
    %v711 = vmul.f32 %v709, %v710
    %v712 = vadd.f32 %v613, %v711
    %v713 = vtanh.pop %v712
    %v714 = vsub.f32 1.0, %v709
    %716 = vrot.lane.b32.xlu0 %v713, 64
    %v717 = vpop.permute.xlu0 %716
    %v719 = vmul.f32 %v714, %v717
    %v720 = vmul.f32 %v709, %v602
    %v721 = vadd.f32 %v719, %v720
    %723 = vrot.lane.b32.xlu0 %v721, 64
    %v724 = vpop.permute.xlu0 %723
    %s726 = scalar_lea.vmem [#allocation3], 24
    %727 = vst.msk [vmem:[%s726] sm:$0xff] %vm92, %v724
    %s728 = scalar_lea.vmem [#allocation3], 32
    %729 = vst.msk [vmem:[%s728] sm:$0xff] %vm371, %v724
    %s730 = scalar_lea.vmem [#allocation2], 64
    %v731 = vld [vmem:[%s730] sm:$0xff]
    %v732 = vld [vmem:[%s730 + $0x8] sm:$0xff]
    %v733 = vld [vmem:[#allocation7] sm:$0xff]
    %v734 = vld [vmem:[#allocation7 + $0x8] sm:$0xff]
    %v735 = vld [vmem:[#allocation7 + $0x10] sm:$0xff]
    %v736 = vld [vmem:[#allocation7 + $0x18] sm:$0xff]
    %v737 = vld [vmem:[#allocation7 + $0x20] sm:$0xff]
    %v738 = vld [vmem:[#allocation7 + $0x28] sm:$0xff]
    %v739 = vld [vmem:[#allocation7 + $0x30] sm:$0xff]
    %v740 = vld [vmem:[#allocation7 + $0x38] sm:$0xff]
    %v741 = vld [vmem:[#allocation7 + $0x40] sm:$0xff]
    %v742 = vld [vmem:[#allocation7 + $0x48] sm:$0xff]
    %v743 = vld [vmem:[#allocation7 + $0x50] sm:$0xff]
    %v744 = vld [vmem:[#allocation7 + $0x58] sm:$0xff]
    %v745 = vld [vmem:[#allocation7 + $0x60] sm:$0xff]
    %v746 = vld [vmem:[#allocation7 + $0x68] sm:$0xff]
    %v747 = vld [vmem:[#allocation7 + $0x70] sm:$0xff]
    %v748 = vld [vmem:[#allocation7 + $0x78] sm:$0xff]
    %v749 = vsel %vm231, %v724, 0
    %751 = vmatprep.subr.mxu0 %v734
    %752 = vmatpush1.msra.mxu0 %v733
    %753 = vmatprep.subr.mxu0 %v736
    %754 = vmatpush1.msra.mxu0 %v735
    %755 = vmatprep.subr.mxu0 %v738
    %756 = vmatpush1.msra.mxu0 %v737
    %757 = vmatprep.subr.mxu0 %v740
    %758 = vmatpush1.msra.mxu0 %v739
    %759 = vmatprep.subr.mxu0 %v742
    %760 = vmatpush1.msra.mxu0 %v741
    %761 = vmatprep.subr.mxu0 %v744
    %762 = vmatpush1.msra.mxu0 %v743
    %763 = vmatprep.subr.mxu0 %v746
    %764 = vmatpush1.msra.mxu0 %v745
    %765 = vmatprep.subr.mxu0 %v748
    %766 = vmatpush1.msra.mxu0 %v747
    %767 = vmatprep.subr.mxu0 0.0
    %768 = vmatpush1.msra.mxu0 0.0
    %769 = vmatprep.subr.mxu0 0.0
    %770 = vmatpush1.msra.mxu0 0.0
    %771 = vmatprep.subr.mxu0 0.0
    %772 = vmatpush1.msra.mxu0 0.0
    %773 = vmatprep.subr.mxu0 0.0
    %774 = vmatpush1.msra.mxu0 0.0
    %775 = vmatprep.subr.mxu0 0.0
    %776 = vmatpush1.msra.mxu0 0.0
    %777 = vmatprep.subr.mxu0 0.0
    %778 = vmatpush1.msra.mxu0 0.0
    %779 = vmatprep.subr.mxu0 0.0
    %780 = vmatpush1.msra.mxu0 0.0
    %781 = vmatprep.subr.mxu0 0.0
    %782 = vmatpush1.msra.mxu0 0.0
    %783 = vmatprep.subr.mxu0 0.0
    %784 = vmatpush1.msra.mxu0 0.0
    %785 = vmatprep.subr.mxu0 0.0
    %786 = vmatpush1.msra.mxu0 0.0
    %787 = vmatprep.subr.mxu0 0.0
    %788 = vmatpush1.msra.mxu0 0.0
    %789 = vmatprep.subr.mxu0 0.0
    %790 = vmatpush1.msra.mxu0 0.0
    %791 = vmatprep.subr.mxu0 0.0
    %792 = vmatpush1.msra.mxu0 0.0
    %793 = vmatprep.subr.mxu0 0.0
    %794 = vmatpush1.msra.mxu0 0.0
    %795 = vmatprep.subr.mxu0 0.0
    %796 = vmatpush1.msra.mxu0 0.0
    %797 = vmatprep.subr.mxu0 0.0
    %798 = vmatpush1.msra.mxu0 0.0
    %799 = vmatprep.subr.mxu0 0.0
    %800 = vmatpush1.msra.mxu0 0.0
    %801 = vmatprep.subr.mxu0 0.0
    %802 = vmatpush1.msra.mxu0 0.0
    %803 = vmatprep.subr.mxu0 0.0
    %804 = vmatpush1.msra.mxu0 0.0
    %805 = vmatprep.subr.mxu0 0.0
    %806 = vmatpush1.msra.mxu0 0.0
    %807 = vmatprep.subr.mxu0 0.0
    %808 = vmatpush1.msra.mxu0 0.0
    %809 = vmatprep.subr.mxu0 0.0
    %810 = vmatpush1.msra.mxu0 0.0
    %811 = vmatprep.subr.mxu0 0.0
    %812 = vmatpush1.msra.mxu0 0.0
    %813 = vmatprep.subr.mxu0 0.0
    %814 = vmatpush1.msra.mxu0 0.0
    %815 = vmatprep.mubr.f32.mxu0 0.0
    %816 = vmatmul.mubr.f32.gmra.mrb[0].mxu0 %v749
    %v817 = vpop.f32.mrb[0].mxu0
    %v818 = vadd.f32 0.0, %v817
    %v819 = vpop.f32.mrb[0].mxu0
    %v820 = vadd.f32 0.0, %v819
    %821 = vdwg.mxu0
    %v822 = vadd.f32 %v731, %v818
    %v823 = vxor.u32 %v822, 2147483648
    %v824 = vmul.f32 %v823, 1.442695
    %v825 = vpow.pop %v824
    %v826 = vadd.f32 %v825, 1.0
    %v827 = vrcp.pop %v826
    %v828 = vmul.f32 1.0, %v827
    %v829 = vadd.f32 %v820, %v252
    %v830 = vmul.f32 %v828, %v829
    %v831 = vadd.f32 %v732, %v830
    %v832 = vtanh.pop %v831
    %v833 = vsub.f32 1.0, %v828
    %835 = vrot.lane.b32.xlu0 %v832, 64
    %v836 = vpop.permute.xlu0 %835
    %v838 = vmul.f32 %v833, %v836
    %v839 = vmul.f32 %v828, %v721
    %v840 = vadd.f32 %v838, %v839
    %842 = vrot.lane.b32.xlu0 %v840, 64
    %v843 = vpop.permute.xlu0 %842
    %845 = vst.msk [vmem:[%s728] sm:$0xff] %vm92, %v843
    %846 = vst.msk [vmem:[%s726] sm:$0xff] %vm371, %v843
    %s847 = scalar_lea.vmem [#allocation2], 80
    %v848 = vld [vmem:[%s847] sm:$0xff]
    %v849 = vld [vmem:[%s847 + $0x8] sm:$0xff]
    %v850 = vld [vmem:[#allocation7] sm:$0xff]
    %v851 = vld [vmem:[#allocation7 + $0x8] sm:$0xff]
    %v852 = vld [vmem:[#allocation7 + $0x10] sm:$0xff]
    %v853 = vld [vmem:[#allocation7 + $0x18] sm:$0xff]
    %v854 = vld [vmem:[#allocation7 + $0x20] sm:$0xff]
    %v855 = vld [vmem:[#allocation7 + $0x28] sm:$0xff]
    %v856 = vld [vmem:[#allocation7 + $0x30] sm:$0xff]
    %v857 = vld [vmem:[#allocation7 + $0x38] sm:$0xff]
    %v858 = vld [vmem:[#allocation7 + $0x40] sm:$0xff]
    %v859 = vld [vmem:[#allocation7 + $0x48] sm:$0xff]
    %v860 = vld [vmem:[#allocation7 + $0x50] sm:$0xff]
    %v861 = vld [vmem:[#allocation7 + $0x58] sm:$0xff]
    %v862 = vld [vmem:[#allocation7 + $0x60] sm:$0xff]
    %v863 = vld [vmem:[#allocation7 + $0x68] sm:$0xff]
    %v864 = vld [vmem:[#allocation7 + $0x70] sm:$0xff]
    %v865 = vld [vmem:[#allocation7 + $0x78] sm:$0xff]
    %v866 = vsel %vm231, %v843, 0
    %868 = vmatprep.subr.mxu0 %v851
    %869 = vmatpush1.msra.mxu0 %v850
    %870 = vmatprep.subr.mxu0 %v853
    %871 = vmatpush1.msra.mxu0 %v852
    %872 = vmatprep.subr.mxu0 %v855
    %873 = vmatpush1.msra.mxu0 %v854
    %874 = vmatprep.subr.mxu0 %v857
    %875 = vmatpush1.msra.mxu0 %v856
    %876 = vmatprep.subr.mxu0 %v859
    %877 = vmatpush1.msra.mxu0 %v858
    %878 = vmatprep.subr.mxu0 %v861
    %879 = vmatpush1.msra.mxu0 %v860
    %880 = vmatprep.subr.mxu0 %v863
    %881 = vmatpush1.msra.mxu0 %v862
    %882 = vmatprep.subr.mxu0 %v865
    %883 = vmatpush1.msra.mxu0 %v864
    %884 = vmatprep.subr.mxu0 0.0
    %885 = vmatpush1.msra.mxu0 0.0
    %886 = vmatprep.subr.mxu0 0.0
    %887 = vmatpush1.msra.mxu0 0.0
    %888 = vmatprep.subr.mxu0 0.0
    %889 = vmatpush1.msra.mxu0 0.0
    %890 = vmatprep.subr.mxu0 0.0
    %891 = vmatpush1.msra.mxu0 0.0
    %892 = vmatprep.subr.mxu0 0.0
    %893 = vmatpush1.msra.mxu0 0.0
    %894 = vmatprep.subr.mxu0 0.0
    %895 = vmatpush1.msra.mxu0 0.0
    %896 = vmatprep.subr.mxu0 0.0
    %897 = vmatpush1.msra.mxu0 0.0
    %898 = vmatprep.subr.mxu0 0.0
    %899 = vmatpush1.msra.mxu0 0.0
    %900 = vmatprep.subr.mxu0 0.0
    %901 = vmatpush1.msra.mxu0 0.0
    %902 = vmatprep.subr.mxu0 0.0
    %903 = vmatpush1.msra.mxu0 0.0
    %904 = vmatprep.subr.mxu0 0.0
    %905 = vmatpush1.msra.mxu0 0.0
    %906 = vmatprep.subr.mxu0 0.0
    %907 = vmatpush1.msra.mxu0 0.0
    %908 = vmatprep.subr.mxu0 0.0
    %909 = vmatpush1.msra.mxu0 0.0
    %910 = vmatprep.subr.mxu0 0.0
    %911 = vmatpush1.msra.mxu0 0.0
    %912 = vmatprep.subr.mxu0 0.0
    %913 = vmatpush1.msra.mxu0 0.0
    %914 = vmatprep.subr.mxu0 0.0
    %915 = vmatpush1.msra.mxu0 0.0
    %916 = vmatprep.subr.mxu0 0.0
    %917 = vmatpush1.msra.mxu0 0.0
    %918 = vmatprep.subr.mxu0 0.0
    %919 = vmatpush1.msra.mxu0 0.0
    %920 = vmatprep.subr.mxu0 0.0
    %921 = vmatpush1.msra.mxu0 0.0
    %922 = vmatprep.subr.mxu0 0.0
    %923 = vmatpush1.msra.mxu0 0.0
    %924 = vmatprep.subr.mxu0 0.0
    %925 = vmatpush1.msra.mxu0 0.0
    %926 = vmatprep.subr.mxu0 0.0
    %927 = vmatpush1.msra.mxu0 0.0
    %928 = vmatprep.subr.mxu0 0.0
    %929 = vmatpush1.msra.mxu0 0.0
    %930 = vmatprep.subr.mxu0 0.0
    %931 = vmatpush1.msra.mxu0 0.0
    %932 = vmatprep.mubr.f32.mxu0 0.0
    %933 = vmatmul.mubr.f32.gmra.mrb[0].mxu0 %v866
    %v934 = vpop.f32.mrb[0].mxu0
    %v935 = vadd.f32 0.0, %v934
    %v936 = vpop.f32.mrb[0].mxu0
    %v937 = vadd.f32 0.0, %v936
    %938 = vdwg.mxu0
    %v939 = vadd.f32 %v848, %v935
    %v940 = vxor.u32 %v939, 2147483648
    %v941 = vmul.f32 %v940, 1.442695
    %v942 = vpow.pop %v941
    %v943 = vadd.f32 %v942, 1.0
    %v944 = vrcp.pop %v943
    %v945 = vmul.f32 1.0, %v944
    %v946 = vadd.f32 %v937, %v252
    %v947 = vmul.f32 %v945, %v946
    %v948 = vadd.f32 %v849, %v947
    %v949 = vtanh.pop %v948
    %v950 = vsub.f32 1.0, %v945
    %952 = vrot.lane.b32.xlu0 %v949, 64
    %v953 = vpop.permute.xlu0 %952
    %v955 = vmul.f32 %v950, %v953
    %v956 = vmul.f32 %v945, %v840
    %v957 = vadd.f32 %v955, %v956
    %959 = vrot.lane.b32.xlu0 %v957, 64
    %v960 = vpop.permute.xlu0 %959
    %962 = vst.msk [vmem:[%s609] sm:$0xff] %vm92, %v960
    %963 = vst.msk [vmem:[%s607] sm:$0xff] %vm371, %v960
    %s964 = scalar_lea.vmem [#allocation2], 96
    %v965 = vld [vmem:[%s964] sm:$0xff]
    %v966 = vld [vmem:[%s964 + $0x8] sm:$0xff]
    %v967 = vld [vmem:[#allocation7] sm:$0xff]
    %v968 = vld [vmem:[#allocation7 + $0x8] sm:$0xff]
    %v969 = vld [vmem:[#allocation7 + $0x10] sm:$0xff]
    %v970 = vld [vmem:[#allocation7 + $0x18] sm:$0xff]
    %v971 = vld [vmem:[#allocation7 + $0x20] sm:$0xff]
    %v972 = vld [vmem:[#allocation7 + $0x28] sm:$0xff]
    %v973 = vld [vmem:[#allocation7 + $0x30] sm:$0xff]
    %v974 = vld [vmem:[#allocation7 + $0x38] sm:$0xff]
    %v975 = vld [vmem:[#allocation7 + $0x40] sm:$0xff]
    %v976 = vld [vmem:[#allocation7 + $0x48] sm:$0xff]
    %v977 = vld [vmem:[#allocation7 + $0x50] sm:$0xff]
    %v978 = vld [vmem:[#allocation7 + $0x58] sm:$0xff]
    %v979 = vld [vmem:[#allocation7 + $0x60] sm:$0xff]
    %v980 = vld [vmem:[#allocation7 + $0x68] sm:$0xff]
    %v981 = vld [vmem:[#allocation7 + $0x70] sm:$0xff]
    %v982 = vld [vmem:[#allocation7 + $0x78] sm:$0xff]
    %v983 = vsel %vm231, %v960, 0
    %985 = vmatprep.subr.mxu0 %v968
    %986 = vmatpush1.msra.mxu0 %v967
    %987 = vmatprep.subr.mxu0 %v970
    %988 = vmatpush1.msra.mxu0 %v969
    %989 = vmatprep.subr.mxu0 %v972
    %990 = vmatpush1.msra.mxu0 %v971
    %991 = vmatprep.subr.mxu0 %v974
    %992 = vmatpush1.msra.mxu0 %v973
    %993 = vmatprep.subr.mxu0 %v976
    %994 = vmatpush1.msra.mxu0 %v975
    %995 = vmatprep.subr.mxu0 %v978
    %996 = vmatpush1.msra.mxu0 %v977
    %997 = vmatprep.subr.mxu0 %v980
    %998 = vmatpush1.msra.mxu0 %v979
    %999 = vmatprep.subr.mxu0 %v982
    %1000 = vmatpush1.msra.mxu0 %v981
    %1001 = vmatprep.subr.mxu0 0.0
    %1002 = vmatpush1.msra.mxu0 0.0
    %1003 = vmatprep.subr.mxu0 0.0
    %1004 = vmatpush1.msra.mxu0 0.0
    %1005 = vmatprep.subr.mxu0 0.0
    %1006 = vmatpush1.msra.mxu0 0.0
    %1007 = vmatprep.subr.mxu0 0.0
    %1008 = vmatpush1.msra.mxu0 0.0
    %1009 = vmatprep.subr.mxu0 0.0
    %1010 = vmatpush1.msra.mxu0 0.0
    %1011 = vmatprep.subr.mxu0 0.0
    %1012 = vmatpush1.msra.mxu0 0.0
    %1013 = vmatprep.subr.mxu0 0.0
    %1014 = vmatpush1.msra.mxu0 0.0
    %1015 = vmatprep.subr.mxu0 0.0
    %1016 = vmatpush1.msra.mxu0 0.0
    %1017 = vmatprep.subr.mxu0 0.0
    %1018 = vmatpush1.msra.mxu0 0.0
    %1019 = vmatprep.subr.mxu0 0.0
    %1020 = vmatpush1.msra.mxu0 0.0
    %1021 = vmatprep.subr.mxu0 0.0
    %1022 = vmatpush1.msra.mxu0 0.0
    %1023 = vmatprep.subr.mxu0 0.0
    %1024 = vmatpush1.msra.mxu0 0.0
    %1025 = vmatprep.subr.mxu0 0.0
    %1026 = vmatpush1.msra.mxu0 0.0
    %1027 = vmatprep.subr.mxu0 0.0
    %1028 = vmatpush1.msra.mxu0 0.0
    %1029 = vmatprep.subr.mxu0 0.0
    %1030 = vmatpush1.msra.mxu0 0.0
    %1031 = vmatprep.subr.mxu0 0.0
    %1032 = vmatpush1.msra.mxu0 0.0
    %1033 = vmatprep.subr.mxu0 0.0
    %1034 = vmatpush1.msra.mxu0 0.0
    %1035 = vmatprep.subr.mxu0 0.0
    %1036 = vmatpush1.msra.mxu0 0.0
    %1037 = vmatprep.subr.mxu0 0.0
    %1038 = vmatpush1.msra.mxu0 0.0
    %1039 = vmatprep.subr.mxu0 0.0
    %1040 = vmatpush1.msra.mxu0 0.0
    %1041 = vmatprep.subr.mxu0 0.0
    %1042 = vmatpush1.msra.mxu0 0.0
    %1043 = vmatprep.subr.mxu0 0.0
    %1044 = vmatpush1.msra.mxu0 0.0
    %1045 = vmatprep.subr.mxu0 0.0
    %1046 = vmatpush1.msra.mxu0 0.0
    %1047 = vmatprep.subr.mxu0 0.0
    %1048 = vmatpush1.msra.mxu0 0.0
    %1049 = vmatprep.mubr.f32.mxu0 0.0
    %1050 = vmatmul.mubr.f32.gmra.mrb[0].mxu0 %v983
    %v1051 = vpop.f32.mrb[0].mxu0
    %v1052 = vadd.f32 0.0, %v1051
    %v1053 = vpop.f32.mrb[0].mxu0
    %v1054 = vadd.f32 0.0, %v1053
    %1055 = vdwg.mxu0
    %v1056 = vadd.f32 %v965, %v1052
    %v1057 = vxor.u32 %v1056, 2147483648
    %v1058 = vmul.f32 %v1057, 1.442695
    %v1059 = vpow.pop %v1058
    %v1060 = vadd.f32 %v1059, 1.0
    %v1061 = vrcp.pop %v1060
    %v1062 = vmul.f32 1.0, %v1061
    %v1063 = vadd.f32 %v1054, %v252
    %v1064 = vmul.f32 %v1062, %v1063
    %v1065 = vadd.f32 %v966, %v1064
    %v1066 = vtanh.pop %v1065
    %v1067 = vsub.f32 1.0, %v1062
    %1069 = vrot.lane.b32.xlu0 %v1066, 64
    %v1070 = vpop.permute.xlu0 %1069
    %v1072 = vmul.f32 %v1067, %v1070
    %v1073 = vmul.f32 %v1062, %v957
    %v1074 = vadd.f32 %v1072, %v1073
    %1076 = vrot.lane.b32.xlu0 %v1074, 64
    %v1077 = vpop.permute.xlu0 %1076
    %1079 = vst.msk [vmem:[%s490] sm:$0xff] %vm92, %v1077
    %1080 = vst.msk [vmem:[%s488] sm:$0xff] %vm371, %v1077
    %s1081 = scalar_lea.vmem [#allocation2], 112
    %v1082 = vld [vmem:[%s1081] sm:$0xff]
    %v1083 = vld [vmem:[%s1081 + $0x8] sm:$0xff]
    %v1084 = vld [vmem:[#allocation7] sm:$0xff]
    %v1085 = vld [vmem:[#allocation7 + $0x8] sm:$0xff]
    %v1086 = vld [vmem:[#allocation7 + $0x10] sm:$0xff]
    %v1087 = vld [vmem:[#allocation7 + $0x18] sm:$0xff]
    %v1088 = vld [vmem:[#allocation7 + $0x20] sm:$0xff]
    %v1089 = vld [vmem:[#allocation7 + $0x28] sm:$0xff]
    %v1090 = vld [vmem:[#allocation7 + $0x30] sm:$0xff]
    %v1091 = vld [vmem:[#allocation7 + $0x38] sm:$0xff]
    %v1092 = vld [vmem:[#allocation7 + $0x40] sm:$0xff]
    %v1093 = vld [vmem:[#allocation7 + $0x48] sm:$0xff]
    %v1094 = vld [vmem:[#allocation7 + $0x50] sm:$0xff]
    %v1095 = vld [vmem:[#allocation7 + $0x58] sm:$0xff]
    %v1096 = vld [vmem:[#allocation7 + $0x60] sm:$0xff]
    %v1097 = vld [vmem:[#allocation7 + $0x68] sm:$0xff]
    %v1098 = vld [vmem:[#allocation7 + $0x70] sm:$0xff]
    %v1099 = vld [vmem:[#allocation7 + $0x78] sm:$0xff]
    %v1100 = vsel %vm231, %v1077, 0
    %1102 = vmatprep.subr.mxu0 %v1085
    %1103 = vmatpush1.msra.mxu0 %v1084
    %1104 = vmatprep.subr.mxu0 %v1087
    %1105 = vmatpush1.msra.mxu0 %v1086
    %1106 = vmatprep.subr.mxu0 %v1089
    %1107 = vmatpush1.msra.mxu0 %v1088
    %1108 = vmatprep.subr.mxu0 %v1091
    %1109 = vmatpush1.msra.mxu0 %v1090
    %1110 = vmatprep.subr.mxu0 %v1093
    %1111 = vmatpush1.msra.mxu0 %v1092
    %1112 = vmatprep.subr.mxu0 %v1095
    %1113 = vmatpush1.msra.mxu0 %v1094
    %1114 = vmatprep.subr.mxu0 %v1097
    %1115 = vmatpush1.msra.mxu0 %v1096
    %1116 = vmatprep.subr.mxu0 %v1099
    %1117 = vmatpush1.msra.mxu0 %v1098
    %1118 = vmatprep.subr.mxu0 0.0
    %1119 = vmatpush1.msra.mxu0 0.0
    %1120 = vmatprep.subr.mxu0 0.0
    %1121 = vmatpush1.msra.mxu0 0.0
    %1122 = vmatprep.subr.mxu0 0.0
    %1123 = vmatpush1.msra.mxu0 0.0
    %1124 = vmatprep.subr.mxu0 0.0
    %1125 = vmatpush1.msra.mxu0 0.0
    %1126 = vmatprep.subr.mxu0 0.0
    %1127 = vmatpush1.msra.mxu0 0.0
    %1128 = vmatprep.subr.mxu0 0.0
    %1129 = vmatpush1.msra.mxu0 0.0
    %1130 = vmatprep.subr.mxu0 0.0
    %1131 = vmatpush1.msra.mxu0 0.0
    %1132 = vmatprep.subr.mxu0 0.0
    %1133 = vmatpush1.msra.mxu0 0.0
    %1134 = vmatprep.subr.mxu0 0.0
    %1135 = vmatpush1.msra.mxu0 0.0
    %1136 = vmatprep.subr.mxu0 0.0
    %1137 = vmatpush1.msra.mxu0 0.0
    %1138 = vmatprep.subr.mxu0 0.0
    %1139 = vmatpush1.msra.mxu0 0.0
    %1140 = vmatprep.subr.mxu0 0.0
    %1141 = vmatpush1.msra.mxu0 0.0
    %1142 = vmatprep.subr.mxu0 0.0
    %1143 = vmatpush1.msra.mxu0 0.0
    %1144 = vmatprep.subr.mxu0 0.0
    %1145 = vmatpush1.msra.mxu0 0.0
    %1146 = vmatprep.subr.mxu0 0.0
    %1147 = vmatpush1.msra.mxu0 0.0
    %1148 = vmatprep.subr.mxu0 0.0
    %1149 = vmatpush1.msra.mxu0 0.0
    %1150 = vmatprep.subr.mxu0 0.0
    %1151 = vmatpush1.msra.mxu0 0.0
    %1152 = vmatprep.subr.mxu0 0.0
    %1153 = vmatpush1.msra.mxu0 0.0
    %1154 = vmatprep.subr.mxu0 0.0
    %1155 = vmatpush1.msra.mxu0 0.0
    %1156 = vmatprep.subr.mxu0 0.0
    %1157 = vmatpush1.msra.mxu0 0.0
    %1158 = vmatprep.subr.mxu0 0.0
    %1159 = vmatpush1.msra.mxu0 0.0
    %1160 = vmatprep.subr.mxu0 0.0
    %1161 = vmatpush1.msra.mxu0 0.0
    %1162 = vmatprep.subr.mxu0 0.0
    %1163 = vmatpush1.msra.mxu0 0.0
    %1164 = vmatprep.subr.mxu0 0.0
    %1165 = vmatpush1.msra.mxu0 0.0
    %1166 = vmatprep.mubr.f32.mxu0 0.0
    %1167 = vmatmul.mubr.f32.gmra.mrb[0].mxu0 %v1100
    %v1168 = vpop.f32.mrb[0].mxu0
    %v1169 = vadd.f32 0.0, %v1168
    %v1170 = vpop.f32.mrb[0].mxu0
    %v1171 = vadd.f32 0.0, %v1170
    %1172 = vdwg.mxu0
    %v1173 = vadd.f32 %v1082, %v1169
    %v1174 = vxor.u32 %v1173, 2147483648
    %v1175 = vmul.f32 %v1174, 1.442695
    %v1176 = vpow.pop %v1175
    %v1177 = vadd.f32 %v1176, 1.0
    %v1178 = vrcp.pop %v1177
    %v1179 = vmul.f32 1.0, %v1178
    %v1180 = vadd.f32 %v1171, %v252
    %v1181 = vmul.f32 %v1179, %v1180
    %v1182 = vadd.f32 %v1083, %v1181
    %v1183 = vtanh.pop %v1182
    %v1184 = vsub.f32 1.0, %v1179
    %1186 = vrot.lane.b32.xlu0 %v1183, 64
    %v1187 = vpop.permute.xlu0 %1186
    %v1189 = vmul.f32 %v1184, %v1187
    %v1190 = vmul.f32 %v1179, %v1074
    %v1191 = vadd.f32 %v1189, %v1190
    %1193 = vrot.lane.b32.xlu0 %v1191, 64
    %v1194 = vpop.permute.xlu0 %1193
    %1196 = vst.msk [vmem:[%s370] sm:$0xff] %vm92, %v1194
    %1197 = vst.msk [vmem:[#allocation3] sm:$0xff] %vm371, %v1194
    %1198 = vst.msk [vmem:[#allocation10] sm:$0xff] %vm92, %v1194
    %1199 = vrot.lane.b32.xlu0 %v1191, 32
    %v1200 = vpop.permute.xlu0 %1199
    %s1202 = scalar_lea.vmem [#allocation10], 8
    %1203 = vst.msk [vmem:[%s1202] sm:$0xff] %vm92, %v1200
    %v1204 = vld [vmem:[#allocation3] sm:$0xff]
    %v1205 = vld [vmem:[#allocation3 + $0x8] sm:$0xff]
    %v1206 = vld [vmem:[#allocation3 + $0x10] sm:$0xff]
    %v1207 = vld [vmem:[#allocation3 + $0x18] sm:$0xff]
    %v1208 = vld [vmem:[#allocation3 + $0x20] sm:$0xff]
    %v1209 = vld [vmem:[#allocation3 + $0x28] sm:$0xff]
    %v1210 = vld [vmem:[#allocation3 + $0x30] sm:$0xff]
    %v1211 = vld [vmem:[#allocation3 + $0x38] sm:$0xff]
    %v1212 = vsel %vm231, %v1204, 0.0
    %1213 = vadd.xlane.f32.xlu0 %v1212
    %v1214 = vpop.xlane.xlu0 %1213
    %v1215 = vsel %vm231, %v1205, 0.0
    %1216 = vadd.xlane.f32.xlu0 %v1215
    %v1217 = vpop.xlane.xlu0 %1216
    %v1218 = vsel %vm231, %v1206, 0.0
    %1219 = vadd.xlane.f32.xlu0 %v1218
    %v1220 = vpop.xlane.xlu0 %1219
    %v1221 = vsel %vm231, %v1207, 0.0
    %1222 = vadd.xlane.f32.xlu0 %v1221
    %v1223 = vpop.xlane.xlu0 %1222
    %v1224 = vsel %vm231, %v1208, 0.0
    %1225 = vadd.xlane.f32.xlu0 %v1224
    %v1226 = vpop.xlane.xlu0 %1225
    %v1227 = vsel %vm231, %v1209, 0.0
    %1228 = vadd.xlane.f32.xlu0 %v1227
    %v1229 = vpop.xlane.xlu0 %1228
    %v1230 = vsel %vm231, %v1210, 0.0
    %1231 = vadd.xlane.f32.xlu0 %v1230
    %v1232 = vpop.xlane.xlu0 %1231
    %v1233 = vsel %vm231, %v1211, 0.0
    %1234 = vadd.xlane.f32.xlu0 %v1233
    %v1235 = vpop.xlane.xlu0 %1234
    %v1236 = vrcp.pop 64.0
    %v1237 = vmul.f32 %v1214, %v1236
    %v1238 = vmul.f32 %v1217, %v1236
    %v1239 = vmul.f32 %v1220, %v1236
    %v1240 = vmul.f32 %v1223, %v1236
    %v1241 = vmul.f32 %v1226, %v1236
    %v1242 = vmul.f32 %v1229, %v1236
    %v1243 = vmul.f32 %v1232, %v1236
    %v1244 = vmul.f32 %v1235, %v1236
    %v1245 = vsub.f32 %v1204, %v1237
    %v1246 = vsub.f32 %v1205, %v1238
    %v1247 = vsub.f32 %v1206, %v1239
    %v1248 = vsub.f32 %v1207, %v1240
    %v1249 = vsub.f32 %v1208, %v1241
    %v1250 = vsub.f32 %v1209, %v1242
    %v1251 = vsub.f32 %v1210, %v1243
    %v1252 = vsub.f32 %v1211, %v1244
    %v1253 = vmul.f32 %v1245, %v1245
    %v1254 = vmul.f32 %v1246, %v1246
    %v1255 = vmul.f32 %v1247, %v1247
    %v1256 = vmul.f32 %v1248, %v1248
    %v1257 = vmul.f32 %v1249, %v1249
    %v1258 = vmul.f32 %v1250, %v1250
    %v1259 = vmul.f32 %v1251, %v1251
    %v1260 = vmul.f32 %v1252, %v1252
    %v1261 = vsel %vm231, %v1253, 0.0
    %1262 = vadd.xlane.f32.xlu0 %v1261
    %v1263 = vpop.xlane.xlu0 %1262
    %v1264 = vsel %vm231, %v1254, 0.0
    %1265 = vadd.xlane.f32.xlu0 %v1264
    %v1266 = vpop.xlane.xlu0 %1265
    %v1267 = vsel %vm231, %v1255, 0.0
    %1268 = vadd.xlane.f32.xlu0 %v1267
    %v1269 = vpop.xlane.xlu0 %1268
    %v1270 = vsel %vm231, %v1256, 0.0
    %1271 = vadd.xlane.f32.xlu0 %v1270
    %v1272 = vpop.xlane.xlu0 %1271
    %v1273 = vsel %vm231, %v1257, 0.0
    %1274 = vadd.xlane.f32.xlu0 %v1273
    %v1275 = vpop.xlane.xlu0 %1274
    %v1276 = vsel %vm231, %v1258, 0.0
    %1277 = vadd.xlane.f32.xlu0 %v1276
    %v1278 = vpop.xlane.xlu0 %1277
    %v1279 = vsel %vm231, %v1259, 0.0
    %1280 = vadd.xlane.f32.xlu0 %v1279
    %v1281 = vpop.xlane.xlu0 %1280
    %v1282 = vsel %vm231, %v1260, 0.0
    %1283 = vadd.xlane.f32.xlu0 %v1282
    %v1284 = vpop.xlane.xlu0 %1283
    %v1285 = vmul.f32 %v1263, %v1236
    %v1286 = vmul.f32 %v1266, %v1236
    %v1287 = vmul.f32 %v1269, %v1236
    %v1288 = vmul.f32 %v1272, %v1236
    %v1289 = vmul.f32 %v1275, %v1236
    %v1290 = vmul.f32 %v1278, %v1236
    %v1291 = vmul.f32 %v1281, %v1236
    %v1292 = vmul.f32 %v1284, %v1236
    %v1293 = vadd.f32 %v1285, 1e-05
    %v1294 = vadd.f32 %v1286, 1e-05
    %v1295 = vadd.f32 %v1287, 1e-05
    %v1296 = vadd.f32 %v1288, 1e-05
    %v1297 = vadd.f32 %v1289, 1e-05
    %v1298 = vadd.f32 %v1290, 1e-05
    %v1299 = vadd.f32 %v1291, 1e-05
    %v1300 = vadd.f32 %v1292, 1e-05
    %v1301 = vrsqrt.pop %v1293
    %v1302 = vrsqrt.pop %v1294
    %v1303 = vrsqrt.pop %v1295
    %v1304 = vrsqrt.pop %v1296
    %v1305 = vrsqrt.pop %v1297
    %v1306 = vrsqrt.pop %v1298
    %v1307 = vrsqrt.pop %v1299
    %v1308 = vrsqrt.pop %v1300
    %v1309 = vmul.f32 %v1245, %v1301
    %v1310 = vmul.f32 %v1246, %v1302
    %v1311 = vmul.f32 %v1247, %v1303
    %v1312 = vmul.f32 %v1248, %v1304
    %v1313 = vmul.f32 %v1249, %v1305
    %v1314 = vmul.f32 %v1250, %v1306
    %v1315 = vmul.f32 %v1251, %v1307
    %v1316 = vmul.f32 %v1252, %v1308
    %v1317 = vld [vmem:[%s5] sm:$0x1]
    %v1319 = vlaneseq
    %v1320 = vshrl.u32 %v1319, 7
    %v1321 = vsub.s32 0, %v1320
    %v1322 = vrot.slane %v1317, %v1321
    %v1324 = vmul.f32 %v1309, %v1322
    %v1325 = vmul.f32 %v1310, %v1322
    %v1326 = vmul.f32 %v1311, %v1322
    %v1327 = vmul.f32 %v1312, %v1322
    %v1328 = vmul.f32 %v1313, %v1322
    %v1329 = vmul.f32 %v1314, %v1322
    %v1330 = vmul.f32 %v1315, %v1322
    %v1331 = vmul.f32 %v1316, %v1322
    %v1332 = vld [vmem:[%s6] sm:$0x1]
    %v1334 = vlaneseq
    %v1335 = vshrl.u32 %v1334, 7
    %v1336 = vsub.s32 0, %v1335
    %v1337 = vrot.slane %v1332, %v1336
    %v1339 = vadd.f32 %v1324, %v1337
    %v1340 = vadd.f32 %v1325, %v1337
    %v1341 = vadd.f32 %v1326, %v1337
    %v1342 = vadd.f32 %v1327, %v1337
    %v1343 = vadd.f32 %v1328, %v1337
    %v1344 = vadd.f32 %v1329, %v1337
    %v1345 = vadd.f32 %v1330, %v1337
    %v1346 = vadd.f32 %v1331, %v1337
    %v1347 = vld [vmem:[%s7] sm:$0xff]
    %v1348 = vld [vmem:[%s7 + $0x8] sm:$0xff]
    %v1349 = vld [vmem:[%s7 + $0x10] sm:$0xff]
    %v1350 = vld [vmem:[%s7 + $0x18] sm:$0xff]
    %v1351 = vld [vmem:[%s7 + $0x20] sm:$0xff]
    %v1352 = vld [vmem:[%s7 + $0x28] sm:$0xff]
    %v1353 = vld [vmem:[%s7 + $0x30] sm:$0xff]
    %v1354 = vld [vmem:[%s7 + $0x38] sm:$0xff]
    %v1355 = vld [vmem:[%s8] sm:$0x1]
    %v1357 = vlaneseq
    %v1358 = vshrl.u32 %v1357, 7
    %v1359 = vsub.s32 0, %v1358
    %v1360 = vrot.slane %v1355, %v1359
    %v1363 = vsel %vm231, %v1339, 0
    %v1366 = vsel %vm231, %v1340, 0
    %v1369 = vsel %vm231, %v1341, 0
    %v1372 = vsel %vm231, %v1342, 0
    %v1375 = vsel %vm231, %v1343, 0
    %v1378 = vsel %vm231, %v1344, 0
    %v1381 = vsel %vm231, %v1345, 0
    %v1384 = vsel %vm231, %v1346, 0
    %1386 = vmatprep.subr.mxu0 0.0
    %1387 = vmatpush1.msra.mxu0 %v1347
    %1388 = vmatprep.subr.mxu0 0.0
    %1389 = vmatpush1.msra.mxu0 %v1348
    %1390 = vmatprep.subr.mxu0 0.0
    %1391 = vmatpush1.msra.mxu0 %v1349
    %1392 = vmatprep.subr.mxu0 0.0
    %1393 = vmatpush1.msra.mxu0 %v1350
    %1394 = vmatprep.subr.mxu0 0.0
    %1395 = vmatpush1.msra.mxu0 %v1351
    %1396 = vmatprep.subr.mxu0 0.0
    %1397 = vmatpush1.msra.mxu0 %v1352
    %1398 = vmatprep.subr.mxu0 0.0
    %1399 = vmatpush1.msra.mxu0 %v1353
    %1400 = vmatprep.subr.mxu0 0.0
    %1401 = vmatpush1.msra.mxu0 %v1354
    %1402 = vmatprep.subr.mxu0 0.0
    %1403 = vmatpush1.msra.mxu0 0.0
    %1404 = vmatprep.subr.mxu0 0.0
    %1405 = vmatpush1.msra.mxu0 0.0
    %1406 = vmatprep.subr.mxu0 0.0
    %1407 = vmatpush1.msra.mxu0 0.0
    %1408 = vmatprep.subr.mxu0 0.0
    %1409 = vmatpush1.msra.mxu0 0.0
    %1410 = vmatprep.subr.mxu0 0.0
    %1411 = vmatpush1.msra.mxu0 0.0
    %1412 = vmatprep.subr.mxu0 0.0
    %1413 = vmatpush1.msra.mxu0 0.0
    %1414 = vmatprep.subr.mxu0 0.0
    %1415 = vmatpush1.msra.mxu0 0.0
    %1416 = vmatprep.subr.mxu0 0.0
    %1417 = vmatpush1.msra.mxu0 0.0
    %1418 = vmatprep.subr.mxu0 0.0
    %1419 = vmatpush1.msra.mxu0 0.0
    %1420 = vmatprep.subr.mxu0 0.0
    %1421 = vmatpush1.msra.mxu0 0.0
    %1422 = vmatprep.subr.mxu0 0.0
    %1423 = vmatpush1.msra.mxu0 0.0
    %1424 = vmatprep.subr.mxu0 0.0
    %1425 = vmatpush1.msra.mxu0 0.0
    %1426 = vmatprep.subr.mxu0 0.0
    %1427 = vmatpush1.msra.mxu0 0.0
    %1428 = vmatprep.subr.mxu0 0.0
    %1429 = vmatpush1.msra.mxu0 0.0
    %1430 = vmatprep.subr.mxu0 0.0
    %1431 = vmatpush1.msra.mxu0 0.0
    %1432 = vmatprep.subr.mxu0 0.0
    %1433 = vmatpush1.msra.mxu0 0.0
    %1434 = vmatprep.subr.mxu0 0.0
    %1435 = vmatpush1.msra.mxu0 0.0
    %1436 = vmatprep.subr.mxu0 0.0
    %1437 = vmatpush1.msra.mxu0 0.0
    %1438 = vmatprep.subr.mxu0 0.0
    %1439 = vmatpush1.msra.mxu0 0.0
    %1440 = vmatprep.subr.mxu0 0.0
    %1441 = vmatpush1.msra.mxu0 0.0
    %1442 = vmatprep.subr.mxu0 0.0
    %1443 = vmatpush1.msra.mxu0 0.0
    %1444 = vmatprep.subr.mxu0 0.0
    %1445 = vmatpush1.msra.mxu0 0.0
    %1446 = vmatprep.subr.mxu0 0.0
    %1447 = vmatpush1.msra.mxu0 0.0
    %1448 = vmatprep.subr.mxu0 0.0
    %1449 = vmatpush1.msra.mxu0 0.0
    %1450 = vmatprep.mubr.f32.mxu0 0.0
    %1451 = vmatmul.mubr.f32.gmra.mrb[0].mxu0 %v1363
    %v1452 = vpop.f32.mrb[0].mxu0
    %v1453 = vadd.f32 %v1360, %v1452
    %v1454 = vpop.f32.mrb[0].mxu0
    %1455 = vmatprep.mubr.f32.mxu0 0.0
    %1456 = vmatmul.mubr.f32.gmra.mrb[0].mxu0 %v1366
    %v1457 = vpop.f32.mrb[0].mxu0
    %v1458 = vadd.f32 %v1360, %v1457
    %v1459 = vpop.f32.mrb[0].mxu0
    %1460 = vmatprep.mubr.f32.mxu0 0.0
    %1461 = vmatmul.mubr.f32.gmra.mrb[0].mxu0 %v1369
    %v1462 = vpop.f32.mrb[0].mxu0
    %v1463 = vadd.f32 %v1360, %v1462
    %v1464 = vpop.f32.mrb[0].mxu0
    %1465 = vmatprep.mubr.f32.mxu0 0.0
    %1466 = vmatmul.mubr.f32.gmra.mrb[0].mxu0 %v1372
    %v1467 = vpop.f32.mrb[0].mxu0
    %v1468 = vadd.f32 %v1360, %v1467
    %v1469 = vpop.f32.mrb[0].mxu0
    %1470 = vmatprep.mubr.f32.mxu0 0.0
    %1471 = vmatmul.mubr.f32.gmra.mrb[0].mxu0 %v1375
    %v1472 = vpop.f32.mrb[0].mxu0
    %v1473 = vadd.f32 %v1360, %v1472
    %v1474 = vpop.f32.mrb[0].mxu0
    %1475 = vmatprep.mubr.f32.mxu0 0.0
    %1476 = vmatmul.mubr.f32.gmra.mrb[0].mxu0 %v1378
    %v1477 = vpop.f32.mrb[0].mxu0
    %v1478 = vadd.f32 %v1360, %v1477
    %v1479 = vpop.f32.mrb[0].mxu0
    %1480 = vmatprep.mubr.f32.mxu0 0.0
    %1481 = vmatmul.mubr.f32.gmra.mrb[0].mxu0 %v1381
    %v1482 = vpop.f32.mrb[0].mxu0
    %v1483 = vadd.f32 %v1360, %v1482
    %v1484 = vpop.f32.mrb[0].mxu0
    %1485 = vmatprep.mubr.f32.mxu0 0.0
    %1486 = vmatmul.mubr.f32.gmra.mrb[0].mxu0 %v1384
    %v1487 = vpop.f32.mrb[0].mxu0
    %v1488 = vadd.f32 %v1360, %v1487
    %v1489 = vpop.f32.mrb[0].mxu0
    %1490 = vdwg.mxu0
    %1491 = vst.msk [vmem:[#allocation9] sm:$0xff] %vm92, %v1453
    %1492 = vst.msk [vmem:[#allocation9 + $0x8] sm:$0xff] %vm92, %v1458
    %1493 = vst.msk [vmem:[#allocation9 + $0x10] sm:$0xff] %vm92, %v1463
    %1494 = vst.msk [vmem:[#allocation9 + $0x18] sm:$0xff] %vm92, %v1468
    %1495 = vst.msk [vmem:[#allocation9 + $0x20] sm:$0xff] %vm92, %v1473
    %1496 = vst.msk [vmem:[#allocation9 + $0x28] sm:$0xff] %vm92, %v1478
    %1497 = vst.msk [vmem:[#allocation9 + $0x30] sm:$0xff] %vm92, %v1483
    %1498 = vst.msk [vmem:[#allocation9 + $0x38] sm:$0xff] %vm92, %v1488
    // Predicated region
    $region46: #{tpu_custom_call.1} parent=1 // pred_check
      _
    $region47: #{tpu_custom_call.1} parent=1 // pred_check_branch
      %1500 = sbr.rel (0) target = $region49
    $region48: #{tpu_custom_call.1} parent=1 // pred_region
      %s1502 = ssub.s32 1024, 1024
      %1503 = vsyncadd [#allocation6], %s1502
      %s1504 = sshll.u32 [#allocation9], 4
      %s1505 = int_to_ptr.vmem [resolvable:$true] %s1504
      %1510 = dma.vmem_to_hbm [thread:$0]  %s1505, 1024, %s9, [#allocation6], 128, 128, 8
    $region49: #{tpu_custom_call.1} parent=1 // pred_fallthru
      _
    // Predicated region
    $region50: #{tpu_custom_call.1} parent=1 // pred_check
      _
    $region51: #{tpu_custom_call.1} parent=1 // pred_check_branch
      %1512 = sbr.rel (0) target = $region53
    $region52: #{tpu_custom_call.1} parent=1 // pred_region
      %s1514 = ssub.s32 256, 256
      %1515 = vsyncadd [#allocation11], %s1514
      %s1516 = sshll.u32 [#allocation10], 4
      %s1517 = int_to_ptr.vmem [resolvable:$true] %s1516
      %1522 = dma.vmem_to_hbm [thread:$0]  %s1517, 256, %s10, [#allocation11], 128, 128, 8
    $region53: #{tpu_custom_call.1} parent=1 // pred_fallthru
      _
    // Predicated region
    $region54: #{tpu_custom_call.1} parent=1 // pred_check
      _
    $region55: #{tpu_custom_call.1} parent=1 // pred_check_branch
      %1524 = sbr.rel (0) target = $region57
    $region56: #{tpu_custom_call.1} parent=1 // pred_region
      %1525 = dma.done [#allocation6], 1024
    $region57: #{tpu_custom_call.1} parent=1 // pred_fallthru
      _
    // Predicated region
    $region58: #{tpu_custom_call.1} parent=1 // pred_check
      _
    $region59: #{tpu_custom_call.1} parent=1 // pred_check_branch
      %1527 = sbr.rel (0) target = $region61
    $region60: #{tpu_custom_call.1} parent=1 // pred_region
      %1528 = dma.done [#allocation11], 256
    $region61: #{tpu_custom_call.1} parent=1 // pred_fallthru
      _
    %1529 = vsyncpa [#allocation5], 1
    %1530 = vsyncpa [#allocation8], 1
    %1531 = vsyncpa [#allocation6], 1
    %1532 = vsyncpa [#allocation11], 1

</llo_original>
